<compile_context>
chip_gen: v6e
topology: v6e:2x2x1
jax: 0.10.0
libtpu: 0.0.40
codegen_flags: <defaults>
</compile_context>

<pallas_src>
import functools

import jax
import jax.numpy as jnp
from jax import lax
from jax.experimental import pallas as pl
from jax.experimental.pallas import tpu as pltpu


# ---------------------------------------------------------------------------
# Bilinear interpolation (align_corners=False) via interpolation matrices.
# ---------------------------------------------------------------------------
def _interp_matrix(out_size, in_size):
    i = jnp.arange(out_size, dtype=jnp.float32)
    src = (i + 0.5) * (in_size / out_size) - 0.5
    src = jnp.maximum(src, 0.0)                      # PyTorch clamps below at 0
    i0 = jnp.minimum(jnp.floor(src).astype(jnp.int32), in_size - 1)
    i1 = jnp.minimum(i0 + 1, in_size - 1)
    frac = src - i0.astype(jnp.float32)
    return ((1.0 - frac)[:, None] * jax.nn.one_hot(i0, in_size, dtype=jnp.float32)
            + frac[:, None] * jax.nn.one_hot(i1, in_size, dtype=jnp.float32))


def bilinear_resize_nchw(x, out_h, out_w):
    """x: (N, C, H, W) -> (N, C, out_h, out_w); matches F.interpolate bilinear."""
    _, _, h, w = x.shape
    rh = _interp_matrix(out_h, h)
    rw = _interp_matrix(out_w, w)
    return jnp.einsum("Yy,ncyx,Xx->ncYX", rh, x.astype(jnp.float32), rw,
                      precision=lax.Precision.HIGHEST)


# ---------------------------------------------------------------------------
# BatchNorm (eval) folding + layout helpers
# ---------------------------------------------------------------------------
def fold_bn(p, eps=1e-5):
    """Fold Conv2d bias + BatchNorm(eval) into (weight_OIHW, bias)."""
    scale = p["gamma"] / jnp.sqrt(p["var"] + eps)
    w = p["w"] * scale[:, None, None, None]
    b = (p["b"] - p["mean"]) * scale + p["beta"]
    return w, b


def _hpad_flat(x, q0, length):
    """(N,C,H,W) -> (N,C,length): rows padded by 1 (zeros), flattened, front pad q0."""
    n, c, h, w = x.shape
    xf = jnp.pad(x, ((0, 0), (0, 0), (1, 1), (0, 0))).reshape(n, c, (h + 2) * w)
    return jnp.pad(xf, ((0, 0), (0, 0), (q0, length - q0 - (h + 2) * w)))


def _per_tap(wf):
    """(Cout, Cin, 3, 3) -> (9, Cout, Cin)."""
    co, ci = wf.shape[:2]
    return jnp.transpose(wf, (2, 3, 0, 1)).reshape(9, co, ci)


# ---------------------------------------------------------------------------
# The fused Pallas kernel (a block of `bn` batch elements per grid step)
# ---------------------------------------------------------------------------
def _make_merge_kernel(width, hw, length, tap0, woff, cin_b, cf, cout, bn):
    co3 = 3 * cout
    ccat = co3 + cf

    def kernel(m_ref, x_ref, wb_ref, w4_ref, bb_ref, b4_ref, o_ref, cat_ref):
        m_left = m_ref[0:1, :]     # f32; zero where output column x == 0
        m_right = m_ref[1:2, :]    # f32; zero where output column x == W-1

        def conv3x3(load_tap, w_ref, b_ref, co):
            # dx-grouped accumulation; the column-wrap masks are applied to the
            # f32 OUTPUT (commutes with the contraction), so taps stay pure
            # VMEM slices feeding the MXU.  Bias initializes the accumulator.
            acc_c = jnp.broadcast_to(b_ref[...], (co, hw))
            acc_l = jnp.zeros((co, hw), jnp.float32)
            acc_r = jnp.zeros((co, hw), jnp.float32)
            for k in range(9):
                dy, dx = divmod(k, 3)
                p = jnp.dot(w_ref[k], load_tap(tap0 + dy * width + dx),
                            preferred_element_type=jnp.float32)
                if dx == 0:
                    acc_l = acc_l + p
                elif dx == 2:
                    acc_r = acc_r + p
                else:
                    acc_c = acc_c + p
            return jnp.maximum(acc_c + acc_l * m_left + acc_r * m_right, 0.0)

        # Only the pad-lane strips of the branch rows ever need zeros; the feat
        # rows [co3:ccat] are fully overwritten each image.  Zeroed every grid
        # step (cheap, lane-aligned) -- NOT first-step-only, because with
        # dimension_semantics=("parallel",) each TensorCore owns its own
        # scratch and never sees program_id == 0 on the other shard.
        cat_ref[0:co3, 0:woff] = jnp.zeros((co3, woff), cat_ref.dtype)
        if length - woff - hw > 0:
            cat_ref[0:co3, woff + hw:length] = jnp.zeros(
                (co3, length - woff - hw), cat_ref.dtype)

        for b in range(bn):        # static unroll over the per-step batch block
            # conv1/conv2/conv3 fused: one block-diagonal matmul per tap,
            # producing all 3*Cout rows; one lane-dense store into cat_ref.
            y = conv3x3(lambda off, b=b: x_ref[b, 0:cin_b, off:off + hw],
                        wb_ref, bb_ref, co3)
            cat_ref[0:co3, woff:woff + hw] = y.astype(cat_ref.dtype)

            # feat channels (already h-padded / row-flattened / zero-padded on
            # the host) overwrite their rows over the full flat length.
            cat_ref[co3:ccat, :] = x_ref[b, cin_b:cin_b + cf, :]

            # conv4 + BN + ReLU over the VMEM-resident concatenated buffer.
            o_ref[b] = conv3x3(lambda off: cat_ref[:, off:off + hw],
                               w4_ref, b4_ref, cout)

    return kernel


# ---------------------------------------------------------------------------
# Forward pass (NCHW in / NCHW out)
# ---------------------------------------------------------------------------
@functools.partial(jax.jit, static_argnames=("compute_dtype", "batch_block"))
def merge_module_forward(blocks, feat, params, *, compute_dtype=jnp.bfloat16,
                         batch_block=1):
    x1, x2, x3 = blocks
    n, cf, h, w = feat.shape
    c1, c2, c3 = x1.shape[1], x2.shape[1], x3.shape[1]
    cin_b = c1 + c2 + c3
    cout = params["conv1"]["w"].shape[0]
    co3 = 3 * cout
    ccat = co3 + cf
    hw = h * w

    bn = batch_block
    assert n % bn == 0, "batch_block must divide the batch size"

    # Flat-layout geometry: image row 0 starts at a 128-aligned lane offset, so
    # the branch-output store and the feat copy are lane-dense.  (If H*W is not
    # a multiple of 128 the kernel stays correct, just with masked stores.)
    q0 = (-w) % 128 or 128
    length = -(-(q0 + (h + 2) * w + 1) // 128) * 128
    woff = q0 + w            # lane offset of image row 0 (multiple of 128)
    tap0 = q0 - 1            # base tap offset

    # Bilinear resize as two small matmuls (MXU, no gathers).
    r1 = bilinear_resize_nchw(x1, h, w)
    r2 = bilinear_resize_nchw(x2, h, w)
    r3 = bilinear_resize_nchw(x3, h, w)

    # Single channel-concatenated input (resized branches + feat): ONE DMA per step.
    xall = jnp.concatenate([r1, r2, r3, feat.astype(jnp.float32)], axis=1)
    xall = _hpad_flat(xall, q0, length).astype(compute_dtype)

    # Column-wrap masks for the dx=0 / dx=2 taps; kept in f32 (applied to the
    # f32 accumulator -> no bf16 VPU work, important on v5e).
    col = jnp.arange(hw, dtype=jnp.int32) % w
    masks = jnp.stack([col != 0, col != w - 1]).astype(jnp.float32)

    # Fold BN, then pack conv1..3 into one block-diagonal (3*Cout, cin_b)
    # per-tap weight so the branch phase is 9 matmuls instead of 27.
    w1, b1 = fold_bn(params["conv1"])
    w2, b2 = fold_bn(params["conv2"])
    w3, b3 = fold_bn(params["conv3"])
    w4, b4 = fold_bn(params["conv4"])
    wb = jnp.zeros((9, co3, cin_b), jnp.float32)
    wb = wb.at[:, 0:cout, 0:c1].set(_per_tap(w1))
    wb = wb.at[:, cout:2 * cout, c1:c1 + c2].set(_per_tap(w2))
    wb = wb.at[:, 2 * cout:co3, c1 + c2:cin_b].set(_per_tap(w3))
    wb = wb.astype(compute_dtype)
    bb = jnp.concatenate([b1, b2, b3]).reshape(co3, 1).astype(jnp.float32)
    w4p = _per_tap(w4).astype(compute_dtype)
    b4p = b4.reshape(cout, 1).astype(jnp.float32)

    kernel = _make_merge_kernel(w, hw, length, tap0, woff, cin_b, cf, cout, bn)

    inputs = [masks, xall, wb, w4p, bb, b4p]
    flops = 2 * n * hw * 9 * (co3 * cin_b + cout * ccat)
    bytes_accessed = (sum(a.size * a.dtype.itemsize for a in inputs)
                      + n * cout * hw * 4)

    def full_spec(shape):
        nd = len(shape)
        return pl.BlockSpec(shape, lambda i: (0,) * nd)

    out_flat = pl.pallas_call(
        kernel,
        out_shape=jax.ShapeDtypeStruct((n, cout, hw), jnp.float32),
        grid=(n // bn,),
        in_specs=[
            full_spec(masks.shape),
            pl.BlockSpec((bn, cin_b + cf, length), lambda i: (i, 0, 0)),
            full_spec(wb.shape), full_spec(w4p.shape),
            full_spec(bb.shape), full_spec(b4p.shape),
        ],
        out_specs=pl.BlockSpec((bn, cout, hw), lambda i: (i, 0, 0)),
        scratch_shapes=[pltpu.VMEM((ccat, length), compute_dtype)],
        compiler_params=pltpu.CompilerParams(
            dimension_semantics=("parallel",)),
        cost_estimate=pl.CostEstimate(flops=flops, transcendentals=0,
                                      bytes_accessed=bytes_accessed),
    )(*inputs)

    return out_flat.reshape(n, cout, h, w)


# ---------------------------------------------------------------------------
# Pure-JAX reference (lax.conv based).  compute_dtype=bf16 reproduces the
# kernel's bf16-input / f32-accumulate arithmetic for a tight check.
# ---------------------------------------------------------------------------
def _ref_forward(blocks, feat, params, compute_dtype=None):
    x1, x2, x3 = blocks
    _, _, h, w = feat.shape
    prec = lax.Precision.HIGHEST if compute_dtype is None else None

    def conv(x, p):
        wf, bf = fold_bn(p)
        xx, ww = x, wf
        if compute_dtype is not None:
            xx = xx.astype(compute_dtype)
            ww = ww.astype(compute_dtype)
        y = lax.conv_general_dilated(
            xx, ww, window_strides=(1, 1), padding="SAME",
            dimension_numbers=("NCHW", "OIHW", "NCHW"),
            preferred_element_type=jnp.float32, precision=prec)
        return jnp.maximum(y + bf[None, :, None, None], 0.0)

    r1 = bilinear_resize_nchw(x1, h, w)
    r2 = bilinear_resize_nchw(x2, h, w)
    r3 = bilinear_resize_nchw(x3, h, w)
    y1 = conv(r1, params["conv1"])
    y2 = conv(r2, params["conv2"])
    y3 = conv(r3, params["conv3"])
    ft = feat.astype(jnp.float32)
    if compute_dtype is not None:
        y1, y2, y3, ft = (t.astype(compute_dtype) for t in (y1, y2, y3, ft))
    cat = jnp.concatenate([y1, y2, y3, ft], axis=1)
    return conv(cat, params["conv4"])


# ---------------------------------------------------------------------------
# Synthetic, deterministic parameters (Conv2d + BatchNorm2d eval stats)
# ---------------------------------------------------------------------------
def make_conv_bn_params(key, cin, cout):
    kw, kb, kg, kbe, km, kv = jax.random.split(key, 6)
    return dict(
        w=0.05 * jax.random.normal(kw, (cout, cin, 3, 3), jnp.float32),
        b=0.02 * jax.random.normal(kb, (cout,), jnp.float32),
        gamma=1.0 + 0.1 * jax.random.normal(kg, (cout,), jnp.float32),
        beta=0.1 * jax.random.normal(kbe, (cout,), jnp.float32),
        mean=0.1 * jax.random.normal(km, (cout,), jnp.float32),
        var=0.5 + jax.random.uniform(kv, (cout,), jnp.float32),
    )


if __name__ == "__main__":
    in_channels = [4, 8, 6]
    feat_channels = 8
    out_channels = 8
    n = 2

    key = jax.random.PRNGKey(0)
    kp, k1, k2, k3, kf = jax.random.split(key, 5)
    kp1, kp2, kp3, kp4 = jax.random.split(kp, 4)
    params = dict(
        conv1=make_conv_bn_params(kp1, in_channels[0], out_channels),
        conv2=make_conv_bn_params(kp2, in_channels[1], out_channels),
        conv3=make_conv_bn_params(kp3, in_channels[2], out_channels),
        conv4=make_conv_bn_params(kp4, feat_channels + 3 * out_channels,
                                  out_channels),
    )

    # Inputs in PyTorch NCHW convention (multi-scale blocks + feature map).
    x1 = jax.random.normal(k1, (n, in_channels[0], 8, 8), jnp.float32)
    x2 = jax.random.normal(k2, (n, in_channels[1], 4, 4), jnp.float32)
    x3 = jax.random.normal(k3, (n, in_channels[2], 4, 4), jnp.float32)
    feat = jax.random.normal(kf, (n, feat_channels, 16, 16), jnp.float32)

    # References: tight (same bf16-input / f32-accum math) and loose (full f32).
    ref_bf16 = _ref_forward((x1, x2, x3), feat, params,
                            compute_dtype=jnp.bfloat16)
    ref_f32 = _ref_forward((x1, x2, x3), feat, params, compute_dtype=None)

    # Exercise both grid shapes: 1 image/step (2 steps -> one per v7x core) and
    # the batched 2-images/step path.
    for bn in (1, 2):
        out = merge_module_forward((x1, x2, x3), feat, params, batch_block=bn)
        out = jax.block_until_ready(out)
        assert out.shape == (n, out_channels, 16, 16), out.shape

        err = float(jnp.max(jnp.abs(out - ref_bf16)))
        assert jnp.allclose(out, ref_bf16, atol=1e-3, rtol=1e-3), (bn, err)

        err32 = float(jnp.max(jnp.abs(out - ref_f32)))
        assert jnp.allclose(out, ref_f32, atol=5e-2, rtol=5e-2), (bn, err32)

    print("KERNEL_OK")
</pallas_src>

<mosaic_0001>
module attributes {stable_mosaic.version = 11 : i64} {
  func.func @kernel(%arg0: i32, %arg1: memref<2x256xf32, #tpu.memory_space<vmem>>, %arg2: memref<1x26x512xbf16, #tpu.memory_space<vmem>>, %arg3: memref<9x24x18xbf16, #tpu.memory_space<vmem>>, %arg4: memref<9x8x32xbf16, #tpu.memory_space<vmem>>, %arg5: memref<24x1xf32, #tpu.memory_space<vmem>>, %arg6: memref<8x1xf32, #tpu.memory_space<vmem>>, %arg7: memref<1x8x256xf32, #tpu.memory_space<vmem>>, %arg8: memref<32x512xbf16, #tpu.memory_space<vmem>>) attributes {dimension_semantics = [#tpu.dimension_semantics<parallel>], iteration_bounds = array<i64: 2>, scalar_prefetch = 0 : i64, scratch_operands = 1 : i64, tpu.core_type = #tpu.core_type<tc>, window_params = [{pipeline_mode = #tpu.pipeline_mode<synchronous>, transform_indices = @transform_0, window_bounds = array<i64: 2, 256>}, {transform_indices = @transform_1, window_bounds = array<i64: 1, 26, 512>}, {pipeline_mode = #tpu.pipeline_mode<synchronous>, transform_indices = @transform_2, window_bounds = array<i64: 9, 24, 18>}, {pipeline_mode = #tpu.pipeline_mode<synchronous>, transform_indices = @transform_3, window_bounds = array<i64: 9, 8, 32>}, {pipeline_mode = #tpu.pipeline_mode<synchronous>, transform_indices = @transform_4, window_bounds = array<i64: 24, 1>}, {pipeline_mode = #tpu.pipeline_mode<synchronous>, transform_indices = @transform_5, window_bounds = array<i64: 8, 1>}, {transform_indices = @transform_6, window_bounds = array<i64: 1, 8, 256>}]} {
    %c0 = arith.constant 0 : index
    %c0_0 = arith.constant 0 : index
    %0 = vector.load %arg1[%c0, %c0_0] : memref<2x256xf32, #tpu.memory_space<vmem>>, vector<1x256xf32>
    %c1 = arith.constant 1 : index
    %c0_1 = arith.constant 0 : index
    %1 = vector.load %arg1[%c1, %c0_1] : memref<2x256xf32, #tpu.memory_space<vmem>>, vector<1x256xf32>
    %cst = arith.constant 0.000000e+00 : bf16
    %2 = vector.broadcast %cst : bf16 to vector<24x128xbf16>
    %c0_2 = arith.constant 0 : index
    %c0_3 = arith.constant 0 : index
    %3 = vector.load %arg8[%c0_2, %c0_3] : memref<32x512xbf16, #tpu.memory_space<vmem>>, vector<24x128xbf16>
    tpu.vector_store %arg8[%c0_2, %c0_3], %2 {strides = array<i32>} : memref<32x512xbf16, #tpu.memory_space<vmem>>, vector<24x128xbf16>,
    %cst_4 = arith.constant 0.000000e+00 : bf16
    %4 = vector.broadcast %cst_4 : bf16 to vector<24x128xbf16>
    %c0_5 = arith.constant 0 : index
    %c384 = arith.constant 384 : index
    %5 = vector.load %arg8[%c0_5, %c384] : memref<32x512xbf16, #tpu.memory_space<vmem>>, vector<24x128xbf16>
    tpu.vector_store %arg8[%c0_5, %c384], %4 {strides = array<i32>} : memref<32x512xbf16, #tpu.memory_space<vmem>>, vector<24x128xbf16>,
    %c0_6 = arith.constant 0 : index
    %c0_7 = arith.constant 0 : index
    %6 = vector.load %arg5[%c0_6, %c0_7] : memref<24x1xf32, #tpu.memory_space<vmem>>, vector<24x1xf32>
    %7 = vector.shape_cast %6 : vector<24x1xf32> to vector<24x1xf32>
    %8 = vector.broadcast %7 : vector<24x1xf32> to vector<24x256xf32>
    %cst_8 = arith.constant 0.000000e+00 : f32
    %9 = vector.broadcast %cst_8 : f32 to vector<24x256xf32>
    %cst_9 = arith.constant 0.000000e+00 : f32
    %10 = vector.broadcast %cst_9 : f32 to vector<24x256xf32>
    %c0_10 = arith.constant 0 : index
    %c0_11 = arith.constant 0 : index
    %c0_12 = arith.constant 0 : index
    %11 = vector.load %arg3[%c0_10, %c0_11, %c0_12] : memref<9x24x18xbf16, #tpu.memory_space<vmem>>, vector<1x24x18xbf16>
    %12 = vector.shape_cast %11 : vector<1x24x18xbf16> to vector<24x18xbf16>
    %c0_13 = arith.constant 0 : index
    %c0_14 = arith.constant 0 : index
    %c111 = arith.constant 111 : index
    %13 = vector.load %arg2[%c0_13, %c0_14, %c111] : memref<1x26x512xbf16, #tpu.memory_space<vmem>>, vector<1x18x256xbf16>
    %14 = vector.shape_cast %13 : vector<1x18x256xbf16> to vector<18x256xbf16>
    %cst_15 = arith.constant dense<0.000000e+00> : vector<24x256xf32>
    %15 = tpu.matmul %12, %14, %cst_15 {dimension_numbers = #tpu.dot_dimension_numbers<[1], [0], [0], [1], [0, 0, 1, 1], [], []>} : vector<24x18xbf16>, vector<18x256xbf16>, vector<24x256xf32> -> vector<24x256xf32>
    %16 = arith.addf %9, %15 : vector<24x256xf32>
    %c1_16 = arith.constant 1 : index
    %c0_17 = arith.constant 0 : index
    %c0_18 = arith.constant 0 : index
    %17 = vector.load %arg3[%c1_16, %c0_17, %c0_18] : memref<9x24x18xbf16, #tpu.memory_space<vmem>>, vector<1x24x18xbf16>
    %18 = vector.shape_cast %17 : vector<1x24x18xbf16> to vector<24x18xbf16>
    %c0_19 = arith.constant 0 : index
    %c0_20 = arith.constant 0 : index
    %c112 = arith.constant 112 : index
    %19 = vector.load %arg2[%c0_19, %c0_20, %c112] : memref<1x26x512xbf16, #tpu.memory_space<vmem>>, vector<1x18x256xbf16>
    %20 = vector.shape_cast %19 : vector<1x18x256xbf16> to vector<18x256xbf16>
    %cst_21 = arith.constant dense<0.000000e+00> : vector<24x256xf32>
    %21 = tpu.matmul %18, %20, %cst_21 {dimension_numbers = #tpu.dot_dimension_numbers<[1], [0], [0], [1], [0, 0, 1, 1], [], []>} : vector<24x18xbf16>, vector<18x256xbf16>, vector<24x256xf32> -> vector<24x256xf32>
    %22 = arith.addf %8, %21 : vector<24x256xf32>
    %c2 = arith.constant 2 : index
    %c0_22 = arith.constant 0 : index
    %c0_23 = arith.constant 0 : index
    %23 = vector.load %arg3[%c2, %c0_22, %c0_23] : memref<9x24x18xbf16, #tpu.memory_space<vmem>>, vector<1x24x18xbf16>
    %24 = vector.shape_cast %23 : vector<1x24x18xbf16> to vector<24x18xbf16>
    %c0_24 = arith.constant 0 : index
    %c0_25 = arith.constant 0 : index
    %c113 = arith.constant 113 : index
    %25 = vector.load %arg2[%c0_24, %c0_25, %c113] : memref<1x26x512xbf16, #tpu.memory_space<vmem>>, vector<1x18x256xbf16>
    %26 = vector.shape_cast %25 : vector<1x18x256xbf16> to vector<18x256xbf16>
    %cst_26 = arith.constant dense<0.000000e+00> : vector<24x256xf32>
    %27 = tpu.matmul %24, %26, %cst_26 {dimension_numbers = #tpu.dot_dimension_numbers<[1], [0], [0], [1], [0, 0, 1, 1], [], []>} : vector<24x18xbf16>, vector<18x256xbf16>, vector<24x256xf32> -> vector<24x256xf32>
    %28 = arith.addf %10, %27 : vector<24x256xf32>
    %c3 = arith.constant 3 : index
    %c0_27 = arith.constant 0 : index
    %c0_28 = arith.constant 0 : index
    %29 = vector.load %arg3[%c3, %c0_27, %c0_28] : memref<9x24x18xbf16, #tpu.memory_space<vmem>>, vector<1x24x18xbf16>
    %30 = vector.shape_cast %29 : vector<1x24x18xbf16> to vector<24x18xbf16>
    %c0_29 = arith.constant 0 : index
    %c0_30 = arith.constant 0 : index
    %c127 = arith.constant 127 : index
    %31 = vector.load %arg2[%c0_29, %c0_30, %c127] : memref<1x26x512xbf16, #tpu.memory_space<vmem>>, vector<1x18x256xbf16>
    %32 = vector.shape_cast %31 : vector<1x18x256xbf16> to vector<18x256xbf16>
    %cst_31 = arith.constant dense<0.000000e+00> : vector<24x256xf32>
    %33 = tpu.matmul %30, %32, %cst_31 {dimension_numbers = #tpu.dot_dimension_numbers<[1], [0], [0], [1], [0, 0, 1, 1], [], []>} : vector<24x18xbf16>, vector<18x256xbf16>, vector<24x256xf32> -> vector<24x256xf32>
    %34 = arith.addf %16, %33 : vector<24x256xf32>
    %c4 = arith.constant 4 : index
    %c0_32 = arith.constant 0 : index
    %c0_33 = arith.constant 0 : index
    %35 = vector.load %arg3[%c4, %c0_32, %c0_33] : memref<9x24x18xbf16, #tpu.memory_space<vmem>>, vector<1x24x18xbf16>
    %36 = vector.shape_cast %35 : vector<1x24x18xbf16> to vector<24x18xbf16>
    %c0_34 = arith.constant 0 : index
    %c0_35 = arith.constant 0 : index
    %c128 = arith.constant 128 : index
    %37 = vector.load %arg2[%c0_34, %c0_35, %c128] : memref<1x26x512xbf16, #tpu.memory_space<vmem>>, vector<1x18x256xbf16>
    %38 = vector.shape_cast %37 : vector<1x18x256xbf16> to vector<18x256xbf16>
    %cst_36 = arith.constant dense<0.000000e+00> : vector<24x256xf32>
    %39 = tpu.matmul %36, %38, %cst_36 {dimension_numbers = #tpu.dot_dimension_numbers<[1], [0], [0], [1], [0, 0, 1, 1], [], []>} : vector<24x18xbf16>, vector<18x256xbf16>, vector<24x256xf32> -> vector<24x256xf32>
    %40 = arith.addf %22, %39 : vector<24x256xf32>
    %c5 = arith.constant 5 : index
    %c0_37 = arith.constant 0 : index
    %c0_38 = arith.constant 0 : index
    %41 = vector.load %arg3[%c5, %c0_37, %c0_38] : memref<9x24x18xbf16, #tpu.memory_space<vmem>>, vector<1x24x18xbf16>
    %42 = vector.shape_cast %41 : vector<1x24x18xbf16> to vector<24x18xbf16>
    %c0_39 = arith.constant 0 : index
    %c0_40 = arith.constant 0 : index
    %c129 = arith.constant 129 : index
    %43 = vector.load %arg2[%c0_39, %c0_40, %c129] : memref<1x26x512xbf16, #tpu.memory_space<vmem>>, vector<1x18x256xbf16>
    %44 = vector.shape_cast %43 : vector<1x18x256xbf16> to vector<18x256xbf16>
    %cst_41 = arith.constant dense<0.000000e+00> : vector<24x256xf32>
    %45 = tpu.matmul %42, %44, %cst_41 {dimension_numbers = #tpu.dot_dimension_numbers<[1], [0], [0], [1], [0, 0, 1, 1], [], []>} : vector<24x18xbf16>, vector<18x256xbf16>, vector<24x256xf32> -> vector<24x256xf32>
    %46 = arith.addf %28, %45 : vector<24x256xf32>
    %c6 = arith.constant 6 : index
    %c0_42 = arith.constant 0 : index
    %c0_43 = arith.constant 0 : index
    %47 = vector.load %arg3[%c6, %c0_42, %c0_43] : memref<9x24x18xbf16, #tpu.memory_space<vmem>>, vector<1x24x18xbf16>
    %48 = vector.shape_cast %47 : vector<1x24x18xbf16> to vector<24x18xbf16>
    %c0_44 = arith.constant 0 : index
    %c0_45 = arith.constant 0 : index
    %c143 = arith.constant 143 : index
    %49 = vector.load %arg2[%c0_44, %c0_45, %c143] : memref<1x26x512xbf16, #tpu.memory_space<vmem>>, vector<1x18x256xbf16>
    %50 = vector.shape_cast %49 : vector<1x18x256xbf16> to vector<18x256xbf16>
    %cst_46 = arith.constant dense<0.000000e+00> : vector<24x256xf32>
    %51 = tpu.matmul %48, %50, %cst_46 {dimension_numbers = #tpu.dot_dimension_numbers<[1], [0], [0], [1], [0, 0, 1, 1], [], []>} : vector<24x18xbf16>, vector<18x256xbf16>, vector<24x256xf32> -> vector<24x256xf32>
    %52 = arith.addf %34, %51 : vector<24x256xf32>
    %c7 = arith.constant 7 : index
    %c0_47 = arith.constant 0 : index
    %c0_48 = arith.constant 0 : index
    %53 = vector.load %arg3[%c7, %c0_47, %c0_48] : memref<9x24x18xbf16, #tpu.memory_space<vmem>>, vector<1x24x18xbf16>
    %54 = vector.shape_cast %53 : vector<1x24x18xbf16> to vector<24x18xbf16>
    %c0_49 = arith.constant 0 : index
    %c0_50 = arith.constant 0 : index
    %c144 = arith.constant 144 : index
    %55 = vector.load %arg2[%c0_49, %c0_50, %c144] : memref<1x26x512xbf16, #tpu.memory_space<vmem>>, vector<1x18x256xbf16>
    %56 = vector.shape_cast %55 : vector<1x18x256xbf16> to vector<18x256xbf16>
    %cst_51 = arith.constant dense<0.000000e+00> : vector<24x256xf32>
    %57 = tpu.matmul %54, %56, %cst_51 {dimension_numbers = #tpu.dot_dimension_numbers<[1], [0], [0], [1], [0, 0, 1, 1], [], []>} : vector<24x18xbf16>, vector<18x256xbf16>, vector<24x256xf32> -> vector<24x256xf32>
    %58 = arith.addf %40, %57 : vector<24x256xf32>
    %c8 = arith.constant 8 : index
    %c0_52 = arith.constant 0 : index
    %c0_53 = arith.constant 0 : index
    %59 = vector.load %arg3[%c8, %c0_52, %c0_53] : memref<9x24x18xbf16, #tpu.memory_space<vmem>>, vector<1x24x18xbf16>
    %60 = vector.shape_cast %59 : vector<1x24x18xbf16> to vector<24x18xbf16>
    %c0_54 = arith.constant 0 : index
    %c0_55 = arith.constant 0 : index
    %c145 = arith.constant 145 : index
    %61 = vector.load %arg2[%c0_54, %c0_55, %c145] : memref<1x26x512xbf16, #tpu.memory_space<vmem>>, vector<1x18x256xbf16>
    %62 = vector.shape_cast %61 : vector<1x18x256xbf16> to vector<18x256xbf16>
    %cst_56 = arith.constant dense<0.000000e+00> : vector<24x256xf32>
    %63 = tpu.matmul %60, %62, %cst_56 {dimension_numbers = #tpu.dot_dimension_numbers<[1], [0], [0], [1], [0, 0, 1, 1], [], []>} : vector<24x18xbf16>, vector<18x256xbf16>, vector<24x256xf32> -> vector<24x256xf32>
    %64 = arith.addf %46, %63 : vector<24x256xf32>
    %65 = vector.broadcast %0 : vector<1x256xf32> to vector<24x256xf32>
    %66 = arith.mulf %52, %65 : vector<24x256xf32>
    %67 = arith.addf %58, %66 : vector<24x256xf32>
    %68 = vector.broadcast %1 : vector<1x256xf32> to vector<24x256xf32>
    %69 = arith.mulf %64, %68 : vector<24x256xf32>
    %70 = arith.addf %67, %69 : vector<24x256xf32>
    %cst_57 = arith.constant 0.000000e+00 : f32
    %71 = vector.broadcast %cst_57 : f32 to vector<24x256xf32>
    %72 = arith.maximumf %70, %71 : vector<24x256xf32>
    %73 = arith.truncf %72 : vector<24x256xf32> to vector<24x256xbf16>
    %c0_58 = arith.constant 0 : index
    %c128_59 = arith.constant 128 : index
    %74 = vector.load %arg8[%c0_58, %c128_59] : memref<32x512xbf16, #tpu.memory_space<vmem>>, vector<24x256xbf16>
    tpu.vector_store %arg8[%c0_58, %c128_59], %73 {strides = array<i32>} : memref<32x512xbf16, #tpu.memory_space<vmem>>, vector<24x256xbf16>,
    %c0_60 = arith.constant 0 : index
    %c18 = arith.constant 18 : index
    %c0_61 = arith.constant 0 : index
    %75 = vector.load %arg2[%c0_60, %c18, %c0_61] : memref<1x26x512xbf16, #tpu.memory_space<vmem>>, vector<1x8x512xbf16>
    %76 = vector.shape_cast %75 : vector<1x8x512xbf16> to vector<8x512xbf16>
    %c24 = arith.constant 24 : index
    %c0_62 = arith.constant 0 : index
    %77 = vector.load %arg8[%c24, %c0_62] : memref<32x512xbf16, #tpu.memory_space<vmem>>, vector<8x512xbf16>
    tpu.vector_store %arg8[%c24, %c0_62], %76 {strides = array<i32>} : memref<32x512xbf16, #tpu.memory_space<vmem>>, vector<8x512xbf16>,
    %c0_63 = arith.constant 0 : index
    %c0_64 = arith.constant 0 : index
    %78 = vector.load %arg6[%c0_63, %c0_64] : memref<8x1xf32, #tpu.memory_space<vmem>>, vector<8x1xf32>
    %79 = vector.shape_cast %78 : vector<8x1xf32> to vector<8x1xf32>
    %80 = vector.broadcast %79 : vector<8x1xf32> to vector<8x256xf32>
    %cst_65 = arith.constant 0.000000e+00 : f32
    %81 = vector.broadcast %cst_65 : f32 to vector<8x256xf32>
    %cst_66 = arith.constant 0.000000e+00 : f32
    %82 = vector.broadcast %cst_66 : f32 to vector<8x256xf32>
    %c0_67 = arith.constant 0 : index
    %c0_68 = arith.constant 0 : index
    %c0_69 = arith.constant 0 : index
    %83 = vector.load %arg4[%c0_67, %c0_68, %c0_69] : memref<9x8x32xbf16, #tpu.memory_space<vmem>>, vector<1x8x32xbf16>
    %84 = vector.shape_cast %83 : vector<1x8x32xbf16> to vector<8x32xbf16>
    %c0_70 = arith.constant 0 : index
    %c111_71 = arith.constant 111 : index
    %85 = vector.load %arg8[%c0_70, %c111_71] : memref<32x512xbf16, #tpu.memory_space<vmem>>, vector<32x256xbf16>
    %cst_72 = arith.constant dense<0.000000e+00> : vector<8x256xf32>
    %86 = tpu.matmul %84, %85, %cst_72 {dimension_numbers = #tpu.dot_dimension_numbers<[1], [0], [0], [1], [0, 0, 1, 1], [], []>} : vector<8x32xbf16>, vector<32x256xbf16>, vector<8x256xf32> -> vector<8x256xf32>
    %87 = arith.addf %81, %86 : vector<8x256xf32>
    %c1_73 = arith.constant 1 : index
    %c0_74 = arith.constant 0 : index
    %c0_75 = arith.constant 0 : index
    %88 = vector.load %arg4[%c1_73, %c0_74, %c0_75] : memref<9x8x32xbf16, #tpu.memory_space<vmem>>, vector<1x8x32xbf16>
    %89 = vector.shape_cast %88 : vector<1x8x32xbf16> to vector<8x32xbf16>
    %c0_76 = arith.constant 0 : index
    %c112_77 = arith.constant 112 : index
    %90 = vector.load %arg8[%c0_76, %c112_77] : memref<32x512xbf16, #tpu.memory_space<vmem>>, vector<32x256xbf16>
    %cst_78 = arith.constant dense<0.000000e+00> : vector<8x256xf32>
    %91 = tpu.matmul %89, %90, %cst_78 {dimension_numbers = #tpu.dot_dimension_numbers<[1], [0], [0], [1], [0, 0, 1, 1], [], []>} : vector<8x32xbf16>, vector<32x256xbf16>, vector<8x256xf32> -> vector<8x256xf32>
    %92 = arith.addf %80, %91 : vector<8x256xf32>
    %c2_79 = arith.constant 2 : index
    %c0_80 = arith.constant 0 : index
    %c0_81 = arith.constant 0 : index
    %93 = vector.load %arg4[%c2_79, %c0_80, %c0_81] : memref<9x8x32xbf16, #tpu.memory_space<vmem>>, vector<1x8x32xbf16>
    %94 = vector.shape_cast %93 : vector<1x8x32xbf16> to vector<8x32xbf16>
    %c0_82 = arith.constant 0 : index
    %c113_83 = arith.constant 113 : index
    %95 = vector.load %arg8[%c0_82, %c113_83] : memref<32x512xbf16, #tpu.memory_space<vmem>>, vector<32x256xbf16>
    %cst_84 = arith.constant dense<0.000000e+00> : vector<8x256xf32>
    %96 = tpu.matmul %94, %95, %cst_84 {dimension_numbers = #tpu.dot_dimension_numbers<[1], [0], [0], [1], [0, 0, 1, 1], [], []>} : vector<8x32xbf16>, vector<32x256xbf16>, vector<8x256xf32> -> vector<8x256xf32>
    %97 = arith.addf %82, %96 : vector<8x256xf32>
    %c3_85 = arith.constant 3 : index
    %c0_86 = arith.constant 0 : index
    %c0_87 = arith.constant 0 : index
    %98 = vector.load %arg4[%c3_85, %c0_86, %c0_87] : memref<9x8x32xbf16, #tpu.memory_space<vmem>>, vector<1x8x32xbf16>
    %99 = vector.shape_cast %98 : vector<1x8x32xbf16> to vector<8x32xbf16>
    %c0_88 = arith.constant 0 : index
    %c127_89 = arith.constant 127 : index
    %100 = vector.load %arg8[%c0_88, %c127_89] : memref<32x512xbf16, #tpu.memory_space<vmem>>, vector<32x256xbf16>
    %cst_90 = arith.constant dense<0.000000e+00> : vector<8x256xf32>
    %101 = tpu.matmul %99, %100, %cst_90 {dimension_numbers = #tpu.dot_dimension_numbers<[1], [0], [0], [1], [0, 0, 1, 1], [], []>} : vector<8x32xbf16>, vector<32x256xbf16>, vector<8x256xf32> -> vector<8x256xf32>
    %102 = arith.addf %87, %101 : vector<8x256xf32>
    %c4_91 = arith.constant 4 : index
    %c0_92 = arith.constant 0 : index
    %c0_93 = arith.constant 0 : index
    %103 = vector.load %arg4[%c4_91, %c0_92, %c0_93] : memref<9x8x32xbf16, #tpu.memory_space<vmem>>, vector<1x8x32xbf16>
    %104 = vector.shape_cast %103 : vector<1x8x32xbf16> to vector<8x32xbf16>
    %c0_94 = arith.constant 0 : index
    %c128_95 = arith.constant 128 : index
    %105 = vector.load %arg8[%c0_94, %c128_95] : memref<32x512xbf16, #tpu.memory_space<vmem>>, vector<32x256xbf16>
    %cst_96 = arith.constant dense<0.000000e+00> : vector<8x256xf32>
    %106 = tpu.matmul %104, %105, %cst_96 {dimension_numbers = #tpu.dot_dimension_numbers<[1], [0], [0], [1], [0, 0, 1, 1], [], []>} : vector<8x32xbf16>, vector<32x256xbf16>, vector<8x256xf32> -> vector<8x256xf32>
    %107 = arith.addf %92, %106 : vector<8x256xf32>
    %c5_97 = arith.constant 5 : index
    %c0_98 = arith.constant 0 : index
    %c0_99 = arith.constant 0 : index
    %108 = vector.load %arg4[%c5_97, %c0_98, %c0_99] : memref<9x8x32xbf16, #tpu.memory_space<vmem>>, vector<1x8x32xbf16>
    %109 = vector.shape_cast %108 : vector<1x8x32xbf16> to vector<8x32xbf16>
    %c0_100 = arith.constant 0 : index
    %c129_101 = arith.constant 129 : index
    %110 = vector.load %arg8[%c0_100, %c129_101] : memref<32x512xbf16, #tpu.memory_space<vmem>>, vector<32x256xbf16>
    %cst_102 = arith.constant dense<0.000000e+00> : vector<8x256xf32>
    %111 = tpu.matmul %109, %110, %cst_102 {dimension_numbers = #tpu.dot_dimension_numbers<[1], [0], [0], [1], [0, 0, 1, 1], [], []>} : vector<8x32xbf16>, vector<32x256xbf16>, vector<8x256xf32> -> vector<8x256xf32>
    %112 = arith.addf %97, %111 : vector<8x256xf32>
    %c6_103 = arith.constant 6 : index
    %c0_104 = arith.constant 0 : index
    %c0_105 = arith.constant 0 : index
    %113 = vector.load %arg4[%c6_103, %c0_104, %c0_105] : memref<9x8x32xbf16, #tpu.memory_space<vmem>>, vector<1x8x32xbf16>
    %114 = vector.shape_cast %113 : vector<1x8x32xbf16> to vector<8x32xbf16>
    %c0_106 = arith.constant 0 : index
    %c143_107 = arith.constant 143 : index
    %115 = vector.load %arg8[%c0_106, %c143_107] : memref<32x512xbf16, #tpu.memory_space<vmem>>, vector<32x256xbf16>
    %cst_108 = arith.constant dense<0.000000e+00> : vector<8x256xf32>
    %116 = tpu.matmul %114, %115, %cst_108 {dimension_numbers = #tpu.dot_dimension_numbers<[1], [0], [0], [1], [0, 0, 1, 1], [], []>} : vector<8x32xbf16>, vector<32x256xbf16>, vector<8x256xf32> -> vector<8x256xf32>
    %117 = arith.addf %102, %116 : vector<8x256xf32>
    %c7_109 = arith.constant 7 : index
    %c0_110 = arith.constant 0 : index
    %c0_111 = arith.constant 0 : index
    %118 = vector.load %arg4[%c7_109, %c0_110, %c0_111] : memref<9x8x32xbf16, #tpu.memory_space<vmem>>, vector<1x8x32xbf16>
    %119 = vector.shape_cast %118 : vector<1x8x32xbf16> to vector<8x32xbf16>
    %c0_112 = arith.constant 0 : index
    %c144_113 = arith.constant 144 : index
    %120 = vector.load %arg8[%c0_112, %c144_113] : memref<32x512xbf16, #tpu.memory_space<vmem>>, vector<32x256xbf16>
    %cst_114 = arith.constant dense<0.000000e+00> : vector<8x256xf32>
    %121 = tpu.matmul %119, %120, %cst_114 {dimension_numbers = #tpu.dot_dimension_numbers<[1], [0], [0], [1], [0, 0, 1, 1], [], []>} : vector<8x32xbf16>, vector<32x256xbf16>, vector<8x256xf32> -> vector<8x256xf32>
    %122 = arith.addf %107, %121 : vector<8x256xf32>
    %c8_115 = arith.constant 8 : index
    %c0_116 = arith.constant 0 : index
    %c0_117 = arith.constant 0 : index
    %123 = vector.load %arg4[%c8_115, %c0_116, %c0_117] : memref<9x8x32xbf16, #tpu.memory_space<vmem>>, vector<1x8x32xbf16>
    %124 = vector.shape_cast %123 : vector<1x8x32xbf16> to vector<8x32xbf16>
    %c0_118 = arith.constant 0 : index
    %c145_119 = arith.constant 145 : index
    %125 = vector.load %arg8[%c0_118, %c145_119] : memref<32x512xbf16, #tpu.memory_space<vmem>>, vector<32x256xbf16>
    %cst_120 = arith.constant dense<0.000000e+00> : vector<8x256xf32>
    %126 = tpu.matmul %124, %125, %cst_120 {dimension_numbers = #tpu.dot_dimension_numbers<[1], [0], [0], [1], [0, 0, 1, 1], [], []>} : vector<8x32xbf16>, vector<32x256xbf16>, vector<8x256xf32> -> vector<8x256xf32>
    %127 = arith.addf %112, %126 : vector<8x256xf32>
    %128 = vector.broadcast %0 : vector<1x256xf32> to vector<8x256xf32>
    %129 = arith.mulf %117, %128 : vector<8x256xf32>
    %130 = arith.addf %122, %129 : vector<8x256xf32>
    %131 = vector.broadcast %1 : vector<1x256xf32> to vector<8x256xf32>
    %132 = arith.mulf %127, %131 : vector<8x256xf32>
    %133 = arith.addf %130, %132 : vector<8x256xf32>
    %cst_121 = arith.constant 0.000000e+00 : f32
    %134 = vector.broadcast %cst_121 : f32 to vector<8x256xf32>
    %135 = arith.maximumf %133, %134 : vector<8x256xf32>
    %c0_122 = arith.constant 0 : index
    %c0_123 = arith.constant 0 : index
    %c0_124 = arith.constant 0 : index
    %136 = vector.load %arg7[%c0_122, %c0_123, %c0_124] : memref<1x8x256xf32, #tpu.memory_space<vmem>>, vector<1x8x256xf32>
    %137 = vector.shape_cast %136 : vector<1x8x256xf32> to vector<8x256xf32>
    %138 = vector.shape_cast %135 : vector<8x256xf32> to vector<1x8x256xf32>
    tpu.vector_store %arg7[%c0_122, %c0_123, %c0_124], %138 {strides = array<i32>} : memref<1x8x256xf32, #tpu.memory_space<vmem>>, vector<1x8x256xf32>,
    return
  }
  func.func @transform_0(%arg0: i32) -> (i32, i32) {
    %c0_i32 = arith.constant 0 : i32
    %c0_i32_0 = arith.constant 0 : i32
    %c0_i32_1 = arith.constant 0 : i32
    return %c0_i32, %c0_i32_0 : i32, i32
  }
  func.func @transform_1(%arg0: i32) -> (i32, i32, i32) {
    %c0_i32 = arith.constant 0 : i32
    %c0_i32_0 = arith.constant 0 : i32
    %c0_i32_1 = arith.constant 0 : i32
    return %arg0, %c0_i32, %c0_i32_0 : i32, i32, i32
  }
  func.func @transform_2(%arg0: i32) -> (i32, i32, i32) {
    %c0_i32 = arith.constant 0 : i32
    %c0_i32_0 = arith.constant 0 : i32
    %c0_i32_1 = arith.constant 0 : i32
    %c0_i32_2 = arith.constant 0 : i32
    return %c0_i32, %c0_i32_0, %c0_i32_1 : i32, i32, i32
  }
  func.func @transform_3(%arg0: i32) -> (i32, i32, i32) {
    %c0_i32 = arith.constant 0 : i32
    %c0_i32_0 = arith.constant 0 : i32
    %c0_i32_1 = arith.constant 0 : i32
    %c0_i32_2 = arith.constant 0 : i32
    return %c0_i32, %c0_i32_0, %c0_i32_1 : i32, i32, i32
  }
  func.func @transform_4(%arg0: i32) -> (i32, i32) {
    %c0_i32 = arith.constant 0 : i32
    %c0_i32_0 = arith.constant 0 : i32
    %c0_i32_1 = arith.constant 0 : i32
    return %c0_i32, %c0_i32_0 : i32, i32
  }
  func.func @transform_5(%arg0: i32) -> (i32, i32) {
    %c0_i32 = arith.constant 0 : i32
    %c0_i32_0 = arith.constant 0 : i32
    %c0_i32_1 = arith.constant 0 : i32
    return %c0_i32, %c0_i32_0 : i32, i32
  }
  func.func @transform_6(%arg0: i32) -> (i32, i32, i32) {
    %c0_i32 = arith.constant 0 : i32
    %c0_i32_0 = arith.constant 0 : i32
    %c0_i32_1 = arith.constant 0 : i32
    return %arg0, %c0_i32, %c0_i32_0 : i32, i32, i32
  }
}

</mosaic_0001>

<llo_original>
// kernel: merge_module_forward.1
$region0: #{merge_module_forward.1}
  #allocation0 [shape = 'u32[]', space=smem, size = 0x4, offset = 0x4, fixed_abs, tag = 'smem constant byte address 0x4 - core index']
  #allocation1 [shape = 'u32[144,128]{1,0:T(1,128)}', space=vmem, size = 0x12000, scoped, tag = 'internal scratch']
  #allocation2 [shape = 'bf16[32,512]{1,0:T(8,128)(2,1)}', space=vmem, size = 0x8000, scoped, tag = 'scratch operand']
  %s0 = inlined_call_operand.vmem [shape: f32[2,256], index: 0, kind: input, shape index: {}]
  %s1 = inlined_call_operand.vmem [shape: bf16[2,26,512], index: 1, kind: input, shape index: {}]
  %s2 = inlined_call_operand.vmem [shape: bf16[9,24,18], index: 2, kind: input, shape index: {}]
  %s3 = inlined_call_operand.vmem [shape: bf16[9,8,32], index: 3, kind: input, shape index: {}]
  %s4 = inlined_call_operand.vmem [shape: f32[24,1], index: 4, kind: input, shape index: {}]
  %s5 = inlined_call_operand.vmem [shape: f32[8,1], index: 5, kind: input, shape index: {}]
  %s6 = inlined_call_operand.vmem [shape: f32[2,8,256], index: 6, kind: output, shape index: {}]
  %s7 = sld [smem:[#allocation0]]
  $region57: #{merge_module_forward.1} parent=0
    _
  %s9 = ssub.s32 1, %s7
  %s10 = scalar_select 0, %s9, %s7
  loop: start=0, step=1, limit=4
  $region2: #{merge_module_forward.1} parent=0 // loop_pre_header
    _
  $region3: #{merge_module_forward.1} parent=0 // loop_header
    %s12 = sphi 0, %s16
    %p13 = scmp.ge.s32.totalorder %s12, 4
    %s20 = sphi 0, %s20
    %s22 = sphi 0, %s20
    %s23 = sphi 0, %s22
    %s37 = sphi 0, %s23
    %s43 = sphi 0, %s45
    %s46 = sphi 0, %s43
    %s47 = sphi 0, %s46
    %s63 = sphi 0, %s47
    %s67 = sphi 0, %s67
    %s69 = sphi 0, %s67
    %s70 = sphi 0, %s69
    %s84 = sphi 0, %s70
    %s88 = sphi 0, %s88
    %s90 = sphi 0, %s88
    %s91 = sphi 0, %s90
    %s105 = sphi 0, %s91
    %s109 = sphi 0, %s109
    %s111 = sphi 0, %s109
    %s112 = sphi 0, %s111
    %s126 = sphi 0, %s112
    %s130 = sphi 0, %s130
    %s132 = sphi 0, %s130
    %s133 = sphi 0, %s132
    %s147 = sphi 0, %s133
    %s153 = sphi 0, %s155
    %s156 = sphi 0, %s153
    %s157 = sphi 0, %s156
    %s173 = sphi 0, %s157
  $region4: #{merge_module_forward.1} parent=0 // loop_header_branch
    %15 = sbr.rel (%p13) target = $region8
  $region5: #{merge_module_forward.1} parent=0 // loop_body
    %s17 = ssub.s32 %s12, 1
    %s18 = ssub.s32 %s12, 2
    %s19 = sadd.s32 %s12, 1
    %s21 = sadd.s32 %s20, 1
    %p24 = scmp.eq.s32.totalorder %s12, 1
    %p25 = scmp.ne.s32.totalorder %s20, %s22
    %p26 = scmp.eq.s32.totalorder %s12, 0
    %p27 = por %p25, %p26
    %p28 = scmp.ne.s32.totalorder %s20, %s22
    %p29 = scmp.eq.s32.totalorder %s17, 1
    %p30 = por %p28, %p29
    %p31 = scmp.ne.s32.totalorder %s22, %s23
    %p32 = scmp.eq.s32.totalorder %s17, 0
    %p33 = por %p31, %p32
    %p34 = scmp.ne.s32.totalorder %s22, %s23
    %p35 = scmp.eq.s32.totalorder %s18, 1
    %p36 = por %p34, %p35
    %p38 = scmp.ne.s32.totalorder %s23, %s37
    %p39 = scmp.eq.s32.totalorder %s18, 0
    %p40 = por %p38, %p39
    %s41 = ssub.s32 %s12, %s19
    %p42 = scmp.eq.s32.totalorder %s41, 0
    %s44 = sadd.s32 %s43, 1
    %s45 = scalar_select %p42, %s43, %s44
    %p48 = pneg %p42
    %p49 = scmp.eq.s32.totalorder %s12, 1
    %p50 = por %p48, %p49
    %p51 = scmp.ne.s32.totalorder %s43, %s46
    %p52 = scmp.eq.s32.totalorder %s12, 0
    %p53 = por %p51, %p52
    %p54 = scmp.ne.s32.totalorder %s43, %s46
    %p55 = scmp.eq.s32.totalorder %s17, 1
    %p56 = por %p54, %p55
    %p57 = scmp.ne.s32.totalorder %s46, %s47
    %p58 = scmp.eq.s32.totalorder %s17, 0
    %p59 = por %p57, %p58
    %p60 = scmp.ne.s32.totalorder %s46, %s47
    %p61 = scmp.eq.s32.totalorder %s18, 1
    %p62 = por %p60, %p61
    %p64 = scmp.ne.s32.totalorder %s47, %s63
    %p65 = scmp.eq.s32.totalorder %s18, 0
    %p66 = por %p64, %p65
    %s68 = sadd.s32 %s67, 1
    %p71 = scmp.eq.s32.totalorder %s12, 1
    %p72 = scmp.ne.s32.totalorder %s67, %s69
    %p73 = scmp.eq.s32.totalorder %s12, 0
    %p74 = por %p72, %p73
    %p75 = scmp.ne.s32.totalorder %s67, %s69
    %p76 = scmp.eq.s32.totalorder %s17, 1
    %p77 = por %p75, %p76
    %p78 = scmp.ne.s32.totalorder %s69, %s70
    %p79 = scmp.eq.s32.totalorder %s17, 0
    %p80 = por %p78, %p79
    %p81 = scmp.ne.s32.totalorder %s69, %s70
    %p82 = scmp.eq.s32.totalorder %s18, 1
    %p83 = por %p81, %p82
    %p85 = scmp.ne.s32.totalorder %s70, %s84
    %p86 = scmp.eq.s32.totalorder %s18, 0
    %p87 = por %p85, %p86
    %s89 = sadd.s32 %s88, 1
    %p92 = scmp.eq.s32.totalorder %s12, 1
    %p93 = scmp.ne.s32.totalorder %s88, %s90
    %p94 = scmp.eq.s32.totalorder %s12, 0
    %p95 = por %p93, %p94
    %p96 = scmp.ne.s32.totalorder %s88, %s90
    %p97 = scmp.eq.s32.totalorder %s17, 1
    %p98 = por %p96, %p97
    %p99 = scmp.ne.s32.totalorder %s90, %s91
    %p100 = scmp.eq.s32.totalorder %s17, 0
    %p101 = por %p99, %p100
    %p102 = scmp.ne.s32.totalorder %s90, %s91
    %p103 = scmp.eq.s32.totalorder %s18, 1
    %p104 = por %p102, %p103
    %p106 = scmp.ne.s32.totalorder %s91, %s105
    %p107 = scmp.eq.s32.totalorder %s18, 0
    %p108 = por %p106, %p107
    %s110 = sadd.s32 %s109, 1
    %p113 = scmp.eq.s32.totalorder %s12, 1
    %p114 = scmp.ne.s32.totalorder %s109, %s111
    %p115 = scmp.eq.s32.totalorder %s12, 0
    %p116 = por %p114, %p115
    %p117 = scmp.ne.s32.totalorder %s109, %s111
    %p118 = scmp.eq.s32.totalorder %s17, 1
    %p119 = por %p117, %p118
    %p120 = scmp.ne.s32.totalorder %s111, %s112
    %p121 = scmp.eq.s32.totalorder %s17, 0
    %p122 = por %p120, %p121
    %p123 = scmp.ne.s32.totalorder %s111, %s112
    %p124 = scmp.eq.s32.totalorder %s18, 1
    %p125 = por %p123, %p124
    %p127 = scmp.ne.s32.totalorder %s112, %s126
    %p128 = scmp.eq.s32.totalorder %s18, 0
    %p129 = por %p127, %p128
    %s131 = sadd.s32 %s130, 1
    %p134 = scmp.eq.s32.totalorder %s12, 1
    %p135 = scmp.ne.s32.totalorder %s130, %s132
    %p136 = scmp.eq.s32.totalorder %s12, 0
    %p137 = por %p135, %p136
    %p138 = scmp.ne.s32.totalorder %s130, %s132
    %p139 = scmp.eq.s32.totalorder %s17, 1
    %p140 = por %p138, %p139
    %p141 = scmp.ne.s32.totalorder %s132, %s133
    %p142 = scmp.eq.s32.totalorder %s17, 0
    %p143 = por %p141, %p142
    %p144 = scmp.ne.s32.totalorder %s132, %s133
    %p145 = scmp.eq.s32.totalorder %s18, 1
    %p146 = por %p144, %p145
    %p148 = scmp.ne.s32.totalorder %s133, %s147
    %p149 = scmp.eq.s32.totalorder %s18, 0
    %p150 = por %p148, %p149
    %s151 = ssub.s32 %s12, %s19
    %p152 = scmp.eq.s32.totalorder %s151, 0
    %s154 = sadd.s32 %s153, 1
    %s155 = scalar_select %p152, %s153, %s154
    %p158 = pneg %p152
    %p159 = scmp.eq.s32.totalorder %s12, 1
    %p160 = por %p158, %p159
    %p161 = scmp.ne.s32.totalorder %s153, %s156
    %p162 = scmp.eq.s32.totalorder %s12, 0
    %p163 = por %p161, %p162
    %p164 = scmp.ne.s32.totalorder %s153, %s156
    %p165 = scmp.eq.s32.totalorder %s17, 1
    %p166 = por %p164, %p165
    %p167 = scmp.ne.s32.totalorder %s156, %s157
    %p168 = scmp.eq.s32.totalorder %s17, 0
    %p169 = por %p167, %p168
    %p170 = scmp.ne.s32.totalorder %s156, %s157
    %p171 = scmp.eq.s32.totalorder %s18, 1
    %p172 = por %p170, %p171
    %p174 = scmp.ne.s32.totalorder %s157, %s173
    %p175 = scmp.eq.s32.totalorder %s18, 0
    %p176 = por %p174, %p175
    %p177 = scmp.le.s32.totalorder 1, %s12
    %p178 = scmp.lt.s32.totalorder %s12, 3
    %p179 = pnand %p177, %p178
    %p180 = pneg %p179
    // Predicated region
    $region9: #{merge_module_forward.1} parent=5 // pred_check
      _
    $region10: #{merge_module_forward.1} parent=5 // pred_check_branch
      %182 = sbr.rel (%p179) target = $region12
    $region11: #{merge_module_forward.1} parent=5 // pred_region
      %s183 = ssub.s32 %s12, 1
      // Predicated region
      $region13: #{merge_module_forward.1} parent=11 // pred_check
        %p184 = pneg %p33
      $region14: #{merge_module_forward.1} parent=11 // pred_check_branch
        %186 = sbr.rel (%p184) target = $region16
      $region15: #{merge_module_forward.1} parent=11 // pred_region
        _
      $region16: #{merge_module_forward.1} parent=11 // pred_fallthru
        _
      // Predicated region
      $region17: #{merge_module_forward.1} parent=11 // pred_check
        %p187 = pneg %p80
      $region18: #{merge_module_forward.1} parent=11 // pred_check_branch
        %189 = sbr.rel (%p187) target = $region20
      $region19: #{merge_module_forward.1} parent=11 // pred_region
        _
      $region20: #{merge_module_forward.1} parent=11 // pred_fallthru
        _
      // Predicated region
      $region21: #{merge_module_forward.1} parent=11 // pred_check
        %p190 = pneg %p101
      $region22: #{merge_module_forward.1} parent=11 // pred_check_branch
        %192 = sbr.rel (%p190) target = $region24
      $region23: #{merge_module_forward.1} parent=11 // pred_region
        _
      $region24: #{merge_module_forward.1} parent=11 // pred_fallthru
        _
      // Predicated region
      $region25: #{merge_module_forward.1} parent=11 // pred_check
        %p193 = pneg %p122
      $region26: #{merge_module_forward.1} parent=11 // pred_check_branch
        %195 = sbr.rel (%p193) target = $region28
      $region27: #{merge_module_forward.1} parent=11 // pred_region
        _
      $region28: #{merge_module_forward.1} parent=11 // pred_fallthru
        _
      // Predicated region
      $region29: #{merge_module_forward.1} parent=11 // pred_check
        %p196 = pneg %p143
      $region30: #{merge_module_forward.1} parent=11 // pred_check_branch
        %198 = sbr.rel (%p196) target = $region32
      $region31: #{merge_module_forward.1} parent=11 // pred_region
        _
      $region32: #{merge_module_forward.1} parent=11 // pred_fallthru
        _
    $region12: #{merge_module_forward.1} parent=5 // pred_fallthru
      _
    %p199 = scmp.lt.s32.totalorder %s12, 2
    // Predicated region
    $region33: #{merge_module_forward.1} parent=5 // pred_check
      %p200 = pneg %p199
    $region34: #{merge_module_forward.1} parent=5 // pred_check_branch
      %202 = sbr.rel (%p200) target = $region36
    $region35: #{merge_module_forward.1} parent=5 // pred_region
      // Predicated region
      $region37: #{merge_module_forward.1} parent=35 // pred_check
        %p203 = pneg %p53
      $region38: #{merge_module_forward.1} parent=35 // pred_check_branch
        %205 = sbr.rel (%p203) target = $region40
      $region39: #{merge_module_forward.1} parent=35 // pred_region
        %p206 = scmp.lt.s32.totalorder %s12, 1
        %s207 = scalar_select %p206, %s12, 1
        %s208 = smul.addr %s207, 16
        %s209 = smul.addr %s208, 4
        %s210 = scalar_lea.vmem %s1, %s209
      $region40: #{merge_module_forward.1} parent=35 // pred_fallthru
        _
    $region36: #{merge_module_forward.1} parent=5 // pred_fallthru
      _
    %p211 = scmp.le.s32.totalorder 1, %s12
    %p212 = scmp.lt.s32.totalorder %s12, 3
    %p213 = pnand %p211, %p212
    %p214 = pneg %p213
    // Predicated region
    $region41: #{merge_module_forward.1} parent=5 // pred_check
      _
    $region42: #{merge_module_forward.1} parent=5 // pred_check_branch
      %216 = sbr.rel (%p213) target = $region44
    $region43: #{merge_module_forward.1} parent=5 // pred_region
      %s217 = ssub.s32 %s12, 1
      %p218 = pneg %p33
      %p219 = pneg %p30
      %p220 = scmp.lt.s32.totalorder %s17, 1
      %s221 = scalar_select %p220, %s17, 1
      %s222 = smul.addr %s221, 16
      %s223 = smul.addr %s222, 4
      %s224 = scalar_lea.vmem %s1, %s223
      %p225 = pneg %p59
      %p226 = pneg %p56
      %p227 = pneg %p80
      %p228 = pneg %p77
      %p229 = pneg %p101
      %p230 = pneg %p98
      %p231 = pneg %p122
      %p232 = pneg %p119
      %p233 = pneg %p143
      %p234 = pneg %p140
      %p235 = pneg %p169
      %p236 = pneg %p166
      %p237 = scmp.lt.s32.totalorder %s17, 1
      %s238 = scalar_select %p237, %s17, 1
      %s239 = smul.addr %s238, 2
      %s240 = smul.addr %s239, 8
      %s241 = scalar_lea.vmem %s6, %s240
      %p242 = scmp.lt.s32.totalorder %s17, 1
      %s243 = scalar_select %p242, %s17, 1
      %s244 = smul.addr %s243, 16
      %s245 = smul.addr %s244, 4
      %s246 = scalar_lea.vmem %s1, %s245
      %p247 = scmp.lt.s32.totalorder %s17, 1
      %s248 = scalar_select %p247, %s17, 1
      %s249 = smul.addr %s248, 2
      %s250 = smul.addr %s249, 8
      %s251 = scalar_lea.vmem %s6, %s250
      %v253 = vld [vmem:[%s0] ss:$2 sm:$0x3]
      %s254 = scalar_lea.vmem %s0, 1
      %v255 = vld [vmem:[%s254] ss:$2 sm:$0x3]
      %256 = vst [vmem:[#allocation2] sm:$0xf] 0
      %257 = vst [vmem:[#allocation2 + $0x10] sm:$0xf] 0
      %258 = vst [vmem:[#allocation2 + $0x20] sm:$0xf] 0
      %259 = vst [vmem:[#allocation2 + $0xc] sm:$0xf] 0
      %260 = vst [vmem:[#allocation2 + $0x1c] sm:$0xf] 0
      %261 = vst [vmem:[#allocation2 + $0x2c] sm:$0xf] 0
      %v262 = vld [vmem:[%s4] sm:$0xff]
      %v263 = vld [vmem:[%s4 + $0x8] sm:$0xff]
      %v264 = vld [vmem:[%s4 + $0x10] sm:$0xff]
      %266 = vset.pattern.permute.xlu0 0
      %267 = vperm.xlu0 %266, %v262
      %v268 = vpop.permute.xlu0 %267
      %271 = vset.pattern.permute.xlu0 0
      %272 = vperm.xlu0 %271, %v263
      %v273 = vpop.permute.xlu0 %272
      %276 = vset.pattern.permute.xlu0 0
      %277 = vperm.xlu0 %276, %v264
      %v278 = vpop.permute.xlu0 %277
      %v280 = vld [vmem:[%s2] sm:$0xf]
      %v281 = vld [vmem:[%s2 + $0x4] sm:$0xf]
      %v282 = vld [vmem:[%s2 + $0x8] sm:$0xf]
      %v283 = vld [vmem:[%s246] sm:$0xff]
      %v284 = vld [vmem:[%s246 + $0x8] sm:$0xf]
      %v285 = vld [vmem:[%s246 + $0x10] sm:$0xff]
      %v286 = vld [vmem:[%s246 + $0x18] sm:$0xf]
      %v287 = vld [vmem:[%s246 + $0x20] sm:$0x11]
      %v288 = vld [vmem:[%s246 + $0x28] sm:$0x1]
      %s289 = scalar_lea.vmem %s2, 12
      %v290 = vld [vmem:[%s289] sm:$0xf]
      %v291 = vld [vmem:[%s289 + $0x4] sm:$0xf]
      %v292 = vld [vmem:[%s289 + $0x8] sm:$0xf]
      %v296 = vunpack.c.l.b16 %v290
      %v297 = vunpack.c.l.b16 %v291
      %v298 = vunpack.c.l.b16 %v292
      %v299 = vpack.c.b16 %v297, %v296
      %v300 = vpack.c.b16 %v298, %v298
      %v307 = vunpack.c.l.b16 %v283
      %v308 = vunpack.c.h.b16 %v283
      %v309 = vunpack.c.l.b16 %v284
      %v310 = vunpack.c.l.b16 %v285
      %v311 = vunpack.c.h.b16 %v285
      %v312 = vunpack.c.l.b16 %v286
      %v313 = vunpack.c.l.b16 %v287
      %v314 = vunpack.c.h.b16 %v287
      %v315 = vunpack.c.l.b16 %v288
      %v316 = vpack.c.b16 %v310, %v307
      %v317 = vpack.c.b16 %v311, %v308
      %v318 = vpack.c.b16 %v312, %v309
      %v319 = vpack.c.b16 %v313, %v313
      %v320 = vpack.c.b16 %v314, %v314
      %v321 = vpack.c.b16 %v315, %v315
      %322 = vrot.lane.b32.xlu0 %v316, 16
      %v323 = vpop.permute.xlu0 %322
      %324 = vrot.lane.b32.xlu0 %v317, 16
      %v325 = vpop.permute.xlu0 %324
      %326 = vrot.lane.b32.xlu0 %v318, 16
      %v327 = vpop.permute.xlu0 %326
      %328 = vrot.lane.b32.xlu0 %v319, 16
      %v329 = vpop.permute.xlu0 %328
      %330 = vrot.lane.b32.xlu0 %v320, 16
      %v331 = vpop.permute.xlu0 %330
      %332 = vrot.lane.b32.xlu0 %v321, 16
      %v333 = vpop.permute.xlu0 %332
      %vm334 = vcmask 130048
      %v335 = vsel %vm334, %v323, %v325
      %v336 = vsel %vm334, %v325, %v327
      %v337 = vsel %vm334, %v329, %v331
      %v338 = vsel %vm334, %v331, %v333
      %vm341 = vcmask 146432
      %v343 = vsel %vm341, %v299, 0
      %v346 = vsel %vm341, %v300, 0
      %vm348 = vcmask 1040384
      %v350 = vsel %vm348, %v337, 0
      %v353 = vsel %vm348, %v338, 0
      %355 = vmatprep.subr.bf16.mxu0 0
      %356 = vmatpush1.bf16.msra.mxu0 0
      %357 = vmatprep.subr.bf16.mxu0 0
      %358 = vmatpush1.bf16.msra.mxu0 0
      %359 = vmatprep.subr.bf16.mxu0 0
      %360 = vmatpush1.bf16.msra.mxu0 0
      %361 = vmatprep.subr.bf16.mxu0 0
      %362 = vmatpush1.bf16.msra.mxu0 0
      %363 = vmatprep.subr.bf16.mxu0 0
      %364 = vmatpush1.bf16.msra.mxu0 0
      %365 = vmatprep.subr.bf16.mxu0 0
      %366 = vmatpush1.bf16.msra.mxu0 0
      %367 = vmatprep.subr.bf16.mxu0 %v353
      %368 = vmatpush1.bf16.msra.mxu0 %v350
      %369 = vmatprep.subr.bf16.mxu0 %v336
      %370 = vmatpush1.bf16.msra.mxu0 %v335
      %371 = vmatprep.subr.bf16.mxu0 0
      %372 = vmatpush2.bf16.msra.mxu0 0
      %373 = vmatprep.subr.bf16.mxu0 0
      %374 = vmatpush2.bf16.msra.mxu0 0
      %375 = vmatprep.subr.bf16.mxu0 0
      %376 = vmatpush2.bf16.msra.mxu0 0
      %377 = vmatprep.subr.bf16.mxu0 0
      %378 = vmatpush2.bf16.msra.mxu0 0
      %379 = vmatprep.subr.bf16.mxu0 0
      %380 = vmatpush2.bf16.msra.mxu0 0
      %381 = vmatprep.subr.bf16.mxu0 0
      %382 = vmatpush2.bf16.msra.mxu0 0
      %383 = vmatprep.subr.bf16.mxu0 0
      %384 = vmatpush2.bf16.msra.mxu0 0
      %385 = vmatprep.subr.bf16.mxu0 0
      %386 = vmatpush2.bf16.msra.mxu0 0
      %387 = vmatprep.mubr.bf16.mxu0 0
      %388 = vmatmul.mubr.bf16.gmra.mxu0 %v343
      %v389 = vpop.f32.mrf.mxu0
      %v390 = vadd.f32 0.0, %v389
      %v391 = vpop.f32.mrf.mxu0
      %v392 = vadd.f32 0.0, %v391
      %v393 = vpop.f32.mrf.mxu0
      %v394 = vadd.f32 0.0, %v393
      %v395 = vpop.f32.mrf.mxu0
      %v396 = vadd.f32 0.0, %v395
      %397 = vmatprep.mubr.bf16.mxu0 0
      %398 = vmatmul.mubr.bf16.gmra.mxu0 %v346
      %v399 = vpop.f32.mrf.mxu0
      %v400 = vadd.f32 0.0, %v399
      %v401 = vpop.f32.mrf.mxu0
      %v402 = vadd.f32 0.0, %v401
      %v403 = vpop.f32.mrf.mxu0
      %v404 = vpop.f32.mrf.mxu0
      %405 = vdwg.mxu0
      %v406 = vadd.f32 %v268, %v390
      %v407 = vadd.f32 %v268, %v392
      %v408 = vadd.f32 %v273, %v394
      %v409 = vadd.f32 %v273, %v396
      %v410 = vadd.f32 %v278, %v400
      %v411 = vadd.f32 %v278, %v402
      %s412 = scalar_lea.vmem %s2, 24
      %v413 = vld [vmem:[%s412] sm:$0xf]
      %v414 = vld [vmem:[%s412 + $0x4] sm:$0xf]
      %v415 = vld [vmem:[%s412 + $0x8] sm:$0xf]
      %s416 = scalar_lea.vmem %s2, 36
      %v417 = vld [vmem:[%s416] sm:$0xf]
      %v418 = vld [vmem:[%s416 + $0x4] sm:$0xf]
      %v419 = vld [vmem:[%s416 + $0x8] sm:$0xf]
      %v423 = vunpack.c.l.b16 %v417
      %v424 = vunpack.c.l.b16 %v418
      %v425 = vunpack.c.l.b16 %v419
      %v426 = vpack.c.b16 %v424, %v423
      %v427 = vpack.c.b16 %v425, %v425
      %428 = vrot.lane.b32.xlu0 %v316, 1
      %v429 = vpop.permute.xlu0 %428
      %430 = vrot.lane.b32.xlu0 %v317, 1
      %v431 = vpop.permute.xlu0 %430
      %432 = vrot.lane.b32.xlu0 %v318, 1
      %v433 = vpop.permute.xlu0 %432
      %434 = vrot.lane.b32.xlu0 %v319, 1
      %v435 = vpop.permute.xlu0 %434
      %436 = vrot.lane.b32.xlu0 %v320, 1
      %v437 = vpop.permute.xlu0 %436
      %438 = vrot.lane.b32.xlu0 %v321, 1
      %v439 = vpop.permute.xlu0 %438
      %vm440 = vcmask 7168
      %v441 = vsel %vm440, %v429, %v431
      %v442 = vsel %vm440, %v431, %v433
      %v443 = vsel %vm440, %v435, %v437
      %v444 = vsel %vm440, %v437, %v439
      %v448 = vsel %vm341, %v426, 0
      %v451 = vsel %vm341, %v427, 0
      %v454 = vsel %vm348, %v443, 0
      %v457 = vsel %vm348, %v444, 0
      %459 = vmatprep.subr.bf16.mxu0 0
      %460 = vmatpush1.bf16.msra.mxu0 0
      %461 = vmatprep.subr.bf16.mxu0 0
      %462 = vmatpush1.bf16.msra.mxu0 0
      %463 = vmatprep.subr.bf16.mxu0 0
      %464 = vmatpush1.bf16.msra.mxu0 0
      %465 = vmatprep.subr.bf16.mxu0 0
      %466 = vmatpush1.bf16.msra.mxu0 0
      %467 = vmatprep.subr.bf16.mxu0 0
      %468 = vmatpush1.bf16.msra.mxu0 0
      %469 = vmatprep.subr.bf16.mxu0 0
      %470 = vmatpush1.bf16.msra.mxu0 0
      %471 = vmatprep.subr.bf16.mxu0 %v457
      %472 = vmatpush1.bf16.msra.mxu0 %v454
      %473 = vmatprep.subr.bf16.mxu0 %v442
      %474 = vmatpush1.bf16.msra.mxu0 %v441
      %475 = vmatprep.subr.bf16.mxu0 0
      %476 = vmatpush2.bf16.msra.mxu0 0
      %477 = vmatprep.subr.bf16.mxu0 0
      %478 = vmatpush2.bf16.msra.mxu0 0
      %479 = vmatprep.subr.bf16.mxu0 0
      %480 = vmatpush2.bf16.msra.mxu0 0
      %481 = vmatprep.subr.bf16.mxu0 0
      %482 = vmatpush2.bf16.msra.mxu0 0
      %483 = vmatprep.subr.bf16.mxu0 0
      %484 = vmatpush2.bf16.msra.mxu0 0
      %485 = vmatprep.subr.bf16.mxu0 0
      %486 = vmatpush2.bf16.msra.mxu0 0
      %487 = vmatprep.subr.bf16.mxu0 0
      %488 = vmatpush2.bf16.msra.mxu0 0
      %489 = vmatprep.subr.bf16.mxu0 0
      %490 = vmatpush2.bf16.msra.mxu0 0
      %491 = vmatprep.mubr.bf16.mxu0 0
      %492 = vmatmul.mubr.bf16.gmra.mxu0 %v448
      %v493 = vpop.f32.mrf.mxu0
      %v494 = vadd.f32 0.0, %v493
      %v495 = vpop.f32.mrf.mxu0
      %v496 = vadd.f32 0.0, %v495
      %v497 = vpop.f32.mrf.mxu0
      %v498 = vadd.f32 0.0, %v497
      %v499 = vpop.f32.mrf.mxu0
      %v500 = vadd.f32 0.0, %v499
      %501 = vmatprep.mubr.bf16.mxu0 0
      %502 = vmatmul.mubr.bf16.gmra.mxu0 %v451
      %v503 = vpop.f32.mrf.mxu0
      %v504 = vadd.f32 0.0, %v503
      %v505 = vpop.f32.mrf.mxu0
      %v506 = vadd.f32 0.0, %v505
      %v507 = vpop.f32.mrf.mxu0
      %v508 = vpop.f32.mrf.mxu0
      %509 = vdwg.mxu0
      %v513 = vunpack.c.l.b16 %v280
      %v514 = vunpack.c.l.b16 %v281
      %v515 = vunpack.c.l.b16 %v282
      %v516 = vpack.c.b16 %v514, %v513
      %v517 = vpack.c.b16 %v515, %v515
      %518 = vrot.lane.b32.xlu0 %v316, 17
      %v519 = vpop.permute.xlu0 %518
      %520 = vrot.lane.b32.xlu0 %v317, 17
      %v521 = vpop.permute.xlu0 %520
      %522 = vrot.lane.b32.xlu0 %v318, 17
      %v523 = vpop.permute.xlu0 %522
      %524 = vrot.lane.b32.xlu0 %v319, 17
      %v525 = vpop.permute.xlu0 %524
      %526 = vrot.lane.b32.xlu0 %v320, 17
      %v527 = vpop.permute.xlu0 %526
      %528 = vrot.lane.b32.xlu0 %v321, 17
      %v529 = vpop.permute.xlu0 %528
      %vm530 = vcmask 138240
      %v531 = vsel %vm530, %v519, %v521
      %v532 = vsel %vm530, %v521, %v523
      %v533 = vsel %vm530, %v525, %v527
      %v534 = vsel %vm530, %v527, %v529
      %v538 = vsel %vm341, %v516, 0
      %v541 = vsel %vm341, %v517, 0
      %v544 = vsel %vm348, %v533, 0
      %v547 = vsel %vm348, %v534, 0
      %549 = vmatprep.subr.bf16.mxu0 0
      %550 = vmatpush1.bf16.msra.mxu0 0
      %551 = vmatprep.subr.bf16.mxu0 0
      %552 = vmatpush1.bf16.msra.mxu0 0
      %553 = vmatprep.subr.bf16.mxu0 0
      %554 = vmatpush1.bf16.msra.mxu0 0
      %555 = vmatprep.subr.bf16.mxu0 0
      %556 = vmatpush1.bf16.msra.mxu0 0
      %557 = vmatprep.subr.bf16.mxu0 0
      %558 = vmatpush1.bf16.msra.mxu0 0
      %559 = vmatprep.subr.bf16.mxu0 0
      %560 = vmatpush1.bf16.msra.mxu0 0
      %561 = vmatprep.subr.bf16.mxu0 %v547
      %562 = vmatpush1.bf16.msra.mxu0 %v544
      %563 = vmatprep.subr.bf16.mxu0 %v532
      %564 = vmatpush1.bf16.msra.mxu0 %v531
      %565 = vmatprep.subr.bf16.mxu0 0
      %566 = vmatpush2.bf16.msra.mxu0 0
      %567 = vmatprep.subr.bf16.mxu0 0
      %568 = vmatpush2.bf16.msra.mxu0 0
      %569 = vmatprep.subr.bf16.mxu0 0
      %570 = vmatpush2.bf16.msra.mxu0 0
      %571 = vmatprep.subr.bf16.mxu0 0
      %572 = vmatpush2.bf16.msra.mxu0 0
      %573 = vmatprep.subr.bf16.mxu0 0
      %574 = vmatpush2.bf16.msra.mxu0 0
      %575 = vmatprep.subr.bf16.mxu0 0
      %576 = vmatpush2.bf16.msra.mxu0 0
      %577 = vmatprep.subr.bf16.mxu0 0
      %578 = vmatpush2.bf16.msra.mxu0 0
      %579 = vmatprep.subr.bf16.mxu0 0
      %580 = vmatpush2.bf16.msra.mxu0 0
      %581 = vmatprep.mubr.bf16.mxu0 0
      %582 = vmatmul.mubr.bf16.gmra.mxu0 %v538
      %v583 = vpop.f32.mrf.mxu0
      %v584 = vadd.f32 %v494, %v583
      %v585 = vpop.f32.mrf.mxu0
      %v586 = vadd.f32 %v496, %v585
      %v587 = vpop.f32.mrf.mxu0
      %v588 = vadd.f32 %v498, %v587
      %v589 = vpop.f32.mrf.mxu0
      %v590 = vadd.f32 %v500, %v589
      %591 = vmatprep.mubr.bf16.mxu0 0
      %592 = vmatmul.mubr.bf16.gmra.mxu0 %v541
      %v593 = vpop.f32.mrf.mxu0
      %v594 = vadd.f32 %v504, %v593
      %v595 = vpop.f32.mrf.mxu0
      %v596 = vadd.f32 %v506, %v595
      %v597 = vpop.f32.mrf.mxu0
      %v598 = vpop.f32.mrf.mxu0
      %599 = vdwg.mxu0
      %s600 = scalar_lea.vmem %s2, 48
      %v601 = vld [vmem:[%s600] sm:$0xf]
      %v602 = vld [vmem:[%s600 + $0x4] sm:$0xf]
      %v603 = vld [vmem:[%s600 + $0x8] sm:$0xf]
      %v604 = vld [vmem:[%s246 + $0x4] sm:$0xff]
      %v605 = vld [vmem:[%s246 + $0x14] sm:$0xff]
      %v606 = vld [vmem:[%s246 + $0x24] sm:$0x11]
      %v610 = vunpack.c.l.b16 %v601
      %v611 = vunpack.c.l.b16 %v602
      %v612 = vunpack.c.l.b16 %v603
      %v613 = vpack.c.b16 %v611, %v610
      %v614 = vpack.c.b16 %v612, %v612
      %v618 = vunpack.c.l.b16 %v604
      %v619 = vunpack.c.h.b16 %v604
      %v620 = vunpack.c.l.b16 %v605
      %v621 = vunpack.c.h.b16 %v605
      %v622 = vunpack.c.l.b16 %v606
      %v623 = vunpack.c.h.b16 %v606
      %v624 = vpack.c.b16 %v620, %v618
      %v625 = vpack.c.b16 %v621, %v619
      %v626 = vpack.c.b16 %v622, %v622
      %v627 = vpack.c.b16 %v623, %v623
      %v631 = vsel %vm341, %v613, 0
      %v634 = vsel %vm341, %v614, 0
      %v637 = vsel %vm348, %v626, 0
      %v640 = vsel %vm348, %v627, 0
      %642 = vmatprep.subr.bf16.mxu0 0
      %643 = vmatpush1.bf16.msra.mxu0 0
      %644 = vmatprep.subr.bf16.mxu0 0
      %645 = vmatpush1.bf16.msra.mxu0 0
      %646 = vmatprep.subr.bf16.mxu0 0
      %647 = vmatpush1.bf16.msra.mxu0 0
      %648 = vmatprep.subr.bf16.mxu0 0
      %649 = vmatpush1.bf16.msra.mxu0 0
      %650 = vmatprep.subr.bf16.mxu0 0
      %651 = vmatpush1.bf16.msra.mxu0 0
      %652 = vmatprep.subr.bf16.mxu0 0
      %653 = vmatpush1.bf16.msra.mxu0 0
      %654 = vmatprep.subr.bf16.mxu0 %v640
      %655 = vmatpush1.bf16.msra.mxu0 %v637
      %656 = vmatprep.subr.bf16.mxu0 %v625
      %657 = vmatpush1.bf16.msra.mxu0 %v624
      %658 = vmatprep.subr.bf16.mxu0 0
      %659 = vmatpush2.bf16.msra.mxu0 0
      %660 = vmatprep.subr.bf16.mxu0 0
      %661 = vmatpush2.bf16.msra.mxu0 0
      %662 = vmatprep.subr.bf16.mxu0 0
      %663 = vmatpush2.bf16.msra.mxu0 0
      %664 = vmatprep.subr.bf16.mxu0 0
      %665 = vmatpush2.bf16.msra.mxu0 0
      %666 = vmatprep.subr.bf16.mxu0 0
      %667 = vmatpush2.bf16.msra.mxu0 0
      %668 = vmatprep.subr.bf16.mxu0 0
      %669 = vmatpush2.bf16.msra.mxu0 0
      %670 = vmatprep.subr.bf16.mxu0 0
      %671 = vmatpush2.bf16.msra.mxu0 0
      %672 = vmatprep.subr.bf16.mxu0 0
      %673 = vmatpush2.bf16.msra.mxu0 0
      %674 = vmatprep.mubr.bf16.mxu0 0
      %675 = vmatmul.mubr.bf16.gmra.mxu0 %v631
      %v676 = vpop.f32.mrf.mxu0
      %v677 = vadd.f32 0.0, %v676
      %v678 = vpop.f32.mrf.mxu0
      %v679 = vadd.f32 0.0, %v678
      %v680 = vpop.f32.mrf.mxu0
      %v681 = vadd.f32 0.0, %v680
      %v682 = vpop.f32.mrf.mxu0
      %v683 = vadd.f32 0.0, %v682
      %684 = vmatprep.mubr.bf16.mxu0 0
      %685 = vmatmul.mubr.bf16.gmra.mxu0 %v634
      %v686 = vpop.f32.mrf.mxu0
      %v687 = vadd.f32 0.0, %v686
      %v688 = vpop.f32.mrf.mxu0
      %v689 = vadd.f32 0.0, %v688
      %v690 = vpop.f32.mrf.mxu0
      %v691 = vpop.f32.mrf.mxu0
      %692 = vdwg.mxu0
      %v693 = vadd.f32 %v406, %v677
      %v694 = vadd.f32 %v407, %v679
      %v695 = vadd.f32 %v408, %v681
      %v696 = vadd.f32 %v409, %v683
      %v697 = vadd.f32 %v410, %v687
      %v698 = vadd.f32 %v411, %v689
      %s699 = scalar_lea.vmem %s2, 60
      %v700 = vld [vmem:[%s699] sm:$0xf]
      %v701 = vld [vmem:[%s699 + $0x4] sm:$0xf]
      %v702 = vld [vmem:[%s699 + $0x8] sm:$0xf]
      %v703 = vld [vmem:[%s246 + $0x4] sm:$0xff]
      %v704 = vld [vmem:[%s246 + $0xc] sm:$0xf]
      %v705 = vld [vmem:[%s246 + $0x14] sm:$0xff]
      %v706 = vld [vmem:[%s246 + $0x1c] sm:$0xf]
      %v707 = vld [vmem:[%s246 + $0x24] sm:$0x11]
      %v708 = vld [vmem:[%s246 + $0x2c] sm:$0x1]
      %v712 = vunpack.c.l.b16 %v700
      %v713 = vunpack.c.l.b16 %v701
      %v714 = vunpack.c.l.b16 %v702
      %v715 = vpack.c.b16 %v713, %v712
      %v716 = vpack.c.b16 %v714, %v714
      %v723 = vunpack.c.l.b16 %v703
      %v724 = vunpack.c.h.b16 %v703
      %v725 = vunpack.c.l.b16 %v704
      %v726 = vunpack.c.l.b16 %v705
      %v727 = vunpack.c.h.b16 %v705
      %v728 = vunpack.c.l.b16 %v706
      %v729 = vunpack.c.l.b16 %v707
      %v730 = vunpack.c.h.b16 %v707
      %v731 = vunpack.c.l.b16 %v708
      %v732 = vpack.c.b16 %v726, %v723
      %v733 = vpack.c.b16 %v727, %v724
      %v734 = vpack.c.b16 %v728, %v725
      %v735 = vpack.c.b16 %v729, %v729
      %v736 = vpack.c.b16 %v730, %v730
      %v737 = vpack.c.b16 %v731, %v731
      %738 = vrot.lane.b32.xlu0 %v732, 127
      %v739 = vpop.permute.xlu0 %738
      %740 = vrot.lane.b32.xlu0 %v733, 127
      %v741 = vpop.permute.xlu0 %740
      %742 = vrot.lane.b32.xlu0 %v734, 127
      %v743 = vpop.permute.xlu0 %742
      %744 = vrot.lane.b32.xlu0 %v735, 127
      %v745 = vpop.permute.xlu0 %744
      %746 = vrot.lane.b32.xlu0 %v736, 127
      %v747 = vpop.permute.xlu0 %746
      %748 = vrot.lane.b32.xlu0 %v737, 127
      %v749 = vpop.permute.xlu0 %748
      %vm750 = vcmask 1039360
      %v751 = vsel %vm750, %v739, %v741
      %v752 = vsel %vm750, %v741, %v743
      %v753 = vsel %vm750, %v745, %v747
      %v754 = vsel %vm750, %v747, %v749
      %v758 = vsel %vm341, %v715, 0
      %v761 = vsel %vm341, %v716, 0
      %v764 = vsel %vm348, %v753, 0
      %v767 = vsel %vm348, %v754, 0
      %769 = vmatprep.subr.bf16.mxu0 0
      %770 = vmatpush1.bf16.msra.mxu0 0
      %771 = vmatprep.subr.bf16.mxu0 0
      %772 = vmatpush1.bf16.msra.mxu0 0
      %773 = vmatprep.subr.bf16.mxu0 0
      %774 = vmatpush1.bf16.msra.mxu0 0
      %775 = vmatprep.subr.bf16.mxu0 0
      %776 = vmatpush1.bf16.msra.mxu0 0
      %777 = vmatprep.subr.bf16.mxu0 0
      %778 = vmatpush1.bf16.msra.mxu0 0
      %779 = vmatprep.subr.bf16.mxu0 0
      %780 = vmatpush1.bf16.msra.mxu0 0
      %781 = vmatprep.subr.bf16.mxu0 %v767
      %782 = vmatpush1.bf16.msra.mxu0 %v764
      %783 = vmatprep.subr.bf16.mxu0 %v752
      %784 = vmatpush1.bf16.msra.mxu0 %v751
      %785 = vmatprep.subr.bf16.mxu0 0
      %786 = vmatpush2.bf16.msra.mxu0 0
      %787 = vmatprep.subr.bf16.mxu0 0
      %788 = vmatpush2.bf16.msra.mxu0 0
      %789 = vmatprep.subr.bf16.mxu0 0
      %790 = vmatpush2.bf16.msra.mxu0 0
      %791 = vmatprep.subr.bf16.mxu0 0
      %792 = vmatpush2.bf16.msra.mxu0 0
      %793 = vmatprep.subr.bf16.mxu0 0
      %794 = vmatpush2.bf16.msra.mxu0 0
      %795 = vmatprep.subr.bf16.mxu0 0
      %796 = vmatpush2.bf16.msra.mxu0 0
      %797 = vmatprep.subr.bf16.mxu0 0
      %798 = vmatpush2.bf16.msra.mxu0 0
      %799 = vmatprep.subr.bf16.mxu0 0
      %800 = vmatpush2.bf16.msra.mxu0 0
      %801 = vmatprep.mubr.bf16.mxu0 0
      %802 = vmatmul.mubr.bf16.gmra.mxu0 %v758
      %v803 = vpop.f32.mrf.mxu0
      %v804 = vadd.f32 0.0, %v803
      %v805 = vpop.f32.mrf.mxu0
      %v806 = vadd.f32 0.0, %v805
      %v807 = vpop.f32.mrf.mxu0
      %v808 = vadd.f32 0.0, %v807
      %v809 = vpop.f32.mrf.mxu0
      %v810 = vadd.f32 0.0, %v809
      %811 = vmatprep.mubr.bf16.mxu0 0
      %812 = vmatmul.mubr.bf16.gmra.mxu0 %v761
      %v813 = vpop.f32.mrf.mxu0
      %v814 = vadd.f32 0.0, %v813
      %v815 = vpop.f32.mrf.mxu0
      %v816 = vadd.f32 0.0, %v815
      %v817 = vpop.f32.mrf.mxu0
      %v818 = vpop.f32.mrf.mxu0
      %819 = vdwg.mxu0
      %v823 = vunpack.c.l.b16 %v413
      %v824 = vunpack.c.l.b16 %v414
      %v825 = vunpack.c.l.b16 %v415
      %v826 = vpack.c.b16 %v824, %v823
      %v827 = vpack.c.b16 %v825, %v825
      %828 = vrot.lane.b32.xlu0 %v316, 15
      %v829 = vpop.permute.xlu0 %828
      %830 = vrot.lane.b32.xlu0 %v317, 15
      %v831 = vpop.permute.xlu0 %830
      %832 = vrot.lane.b32.xlu0 %v318, 15
      %v833 = vpop.permute.xlu0 %832
      %834 = vrot.lane.b32.xlu0 %v319, 15
      %v835 = vpop.permute.xlu0 %834
      %836 = vrot.lane.b32.xlu0 %v320, 15
      %v837 = vpop.permute.xlu0 %836
      %838 = vrot.lane.b32.xlu0 %v321, 15
      %v839 = vpop.permute.xlu0 %838
      %vm840 = vcmask 121856
      %v841 = vsel %vm840, %v829, %v831
      %v842 = vsel %vm840, %v831, %v833
      %v843 = vsel %vm840, %v835, %v837
      %v844 = vsel %vm840, %v837, %v839
      %v848 = vsel %vm341, %v826, 0
      %v851 = vsel %vm341, %v827, 0
      %v854 = vsel %vm348, %v843, 0
      %v857 = vsel %vm348, %v844, 0
      %859 = vmatprep.subr.bf16.mxu0 0
      %860 = vmatpush1.bf16.msra.mxu0 0
      %861 = vmatprep.subr.bf16.mxu0 0
      %862 = vmatpush1.bf16.msra.mxu0 0
      %863 = vmatprep.subr.bf16.mxu0 0
      %864 = vmatpush1.bf16.msra.mxu0 0
      %865 = vmatprep.subr.bf16.mxu0 0
      %866 = vmatpush1.bf16.msra.mxu0 0
      %867 = vmatprep.subr.bf16.mxu0 0
      %868 = vmatpush1.bf16.msra.mxu0 0
      %869 = vmatprep.subr.bf16.mxu0 0
      %870 = vmatpush1.bf16.msra.mxu0 0
      %871 = vmatprep.subr.bf16.mxu0 %v857
      %872 = vmatpush1.bf16.msra.mxu0 %v854
      %873 = vmatprep.subr.bf16.mxu0 %v842
      %874 = vmatpush1.bf16.msra.mxu0 %v841
      %875 = vmatprep.subr.bf16.mxu0 0
      %876 = vmatpush2.bf16.msra.mxu0 0
      %877 = vmatprep.subr.bf16.mxu0 0
      %878 = vmatpush2.bf16.msra.mxu0 0
      %879 = vmatprep.subr.bf16.mxu0 0
      %880 = vmatpush2.bf16.msra.mxu0 0
      %881 = vmatprep.subr.bf16.mxu0 0
      %882 = vmatpush2.bf16.msra.mxu0 0
      %883 = vmatprep.subr.bf16.mxu0 0
      %884 = vmatpush2.bf16.msra.mxu0 0
      %885 = vmatprep.subr.bf16.mxu0 0
      %886 = vmatpush2.bf16.msra.mxu0 0
      %887 = vmatprep.subr.bf16.mxu0 0
      %888 = vmatpush2.bf16.msra.mxu0 0
      %889 = vmatprep.subr.bf16.mxu0 0
      %890 = vmatpush2.bf16.msra.mxu0 0
      %891 = vmatprep.mubr.bf16.mxu0 0
      %892 = vmatmul.mubr.bf16.gmra.mxu0 %v848
      %v893 = vpop.f32.mrf.mxu0
      %v894 = vadd.f32 %v804, %v893
      %v895 = vpop.f32.mrf.mxu0
      %v896 = vadd.f32 %v806, %v895
      %v897 = vpop.f32.mrf.mxu0
      %v898 = vadd.f32 %v808, %v897
      %v899 = vpop.f32.mrf.mxu0
      %v900 = vadd.f32 %v810, %v899
      %901 = vmatprep.mubr.bf16.mxu0 0
      %902 = vmatmul.mubr.bf16.gmra.mxu0 %v851
      %v903 = vpop.f32.mrf.mxu0
      %v904 = vadd.f32 %v814, %v903
      %v905 = vpop.f32.mrf.mxu0
      %v906 = vadd.f32 %v816, %v905
      %v907 = vpop.f32.mrf.mxu0
      %v908 = vpop.f32.mrf.mxu0
      %909 = vdwg.mxu0
      %s910 = scalar_lea.vmem %s2, 72
      %v911 = vld [vmem:[%s910] sm:$0xf]
      %v912 = vld [vmem:[%s910 + $0x4] sm:$0xf]
      %v913 = vld [vmem:[%s910 + $0x8] sm:$0xf]
      %v917 = vunpack.c.l.b16 %v911
      %v918 = vunpack.c.l.b16 %v912
      %v919 = vunpack.c.l.b16 %v913
      %v920 = vpack.c.b16 %v918, %v917
      %v921 = vpack.c.b16 %v919, %v919
      %922 = vrot.lane.b32.xlu0 %v732, 113
      %v923 = vpop.permute.xlu0 %922
      %924 = vrot.lane.b32.xlu0 %v733, 113
      %v925 = vpop.permute.xlu0 %924
      %926 = vrot.lane.b32.xlu0 %v734, 113
      %v927 = vpop.permute.xlu0 %926
      %928 = vrot.lane.b32.xlu0 %v735, 113
      %v929 = vpop.permute.xlu0 %928
      %930 = vrot.lane.b32.xlu0 %v736, 113
      %v931 = vpop.permute.xlu0 %930
      %932 = vrot.lane.b32.xlu0 %v737, 113
      %v933 = vpop.permute.xlu0 %932
      %vm934 = vcmask 924672
      %v935 = vsel %vm934, %v923, %v925
      %v936 = vsel %vm934, %v925, %v927
      %v937 = vsel %vm934, %v929, %v931
      %v938 = vsel %vm934, %v931, %v933
      %v942 = vsel %vm341, %v920, 0
      %v945 = vsel %vm341, %v921, 0
      %v948 = vsel %vm348, %v937, 0
      %v951 = vsel %vm348, %v938, 0
      %953 = vmatprep.subr.bf16.mxu0 0
      %954 = vmatpush1.bf16.msra.mxu0 0
      %955 = vmatprep.subr.bf16.mxu0 0
      %956 = vmatpush1.bf16.msra.mxu0 0
      %957 = vmatprep.subr.bf16.mxu0 0
      %958 = vmatpush1.bf16.msra.mxu0 0
      %959 = vmatprep.subr.bf16.mxu0 0
      %960 = vmatpush1.bf16.msra.mxu0 0
      %961 = vmatprep.subr.bf16.mxu0 0
      %962 = vmatpush1.bf16.msra.mxu0 0
      %963 = vmatprep.subr.bf16.mxu0 0
      %964 = vmatpush1.bf16.msra.mxu0 0
      %965 = vmatprep.subr.bf16.mxu0 %v951
      %966 = vmatpush1.bf16.msra.mxu0 %v948
      %967 = vmatprep.subr.bf16.mxu0 %v936
      %968 = vmatpush1.bf16.msra.mxu0 %v935
      %969 = vmatprep.subr.bf16.mxu0 0
      %970 = vmatpush2.bf16.msra.mxu0 0
      %971 = vmatprep.subr.bf16.mxu0 0
      %972 = vmatpush2.bf16.msra.mxu0 0
      %973 = vmatprep.subr.bf16.mxu0 0
      %974 = vmatpush2.bf16.msra.mxu0 0
      %975 = vmatprep.subr.bf16.mxu0 0
      %976 = vmatpush2.bf16.msra.mxu0 0
      %977 = vmatprep.subr.bf16.mxu0 0
      %978 = vmatpush2.bf16.msra.mxu0 0
      %979 = vmatprep.subr.bf16.mxu0 0
      %980 = vmatpush2.bf16.msra.mxu0 0
      %981 = vmatprep.subr.bf16.mxu0 0
      %982 = vmatpush2.bf16.msra.mxu0 0
      %983 = vmatprep.subr.bf16.mxu0 0
      %984 = vmatpush2.bf16.msra.mxu0 0
      %985 = vmatprep.mubr.bf16.mxu0 0
      %986 = vmatmul.mubr.bf16.gmra.mxu0 %v942
      %v987 = vpop.f32.mrf.mxu0
      %v988 = vadd.f32 0.0, %v987
      %v989 = vpop.f32.mrf.mxu0
      %v990 = vadd.f32 0.0, %v989
      %v991 = vpop.f32.mrf.mxu0
      %v992 = vadd.f32 0.0, %v991
      %v993 = vpop.f32.mrf.mxu0
      %v994 = vadd.f32 0.0, %v993
      %995 = vmatprep.mubr.bf16.mxu0 0
      %996 = vmatmul.mubr.bf16.gmra.mxu0 %v945
      %v997 = vpop.f32.mrf.mxu0
      %v998 = vadd.f32 0.0, %v997
      %v999 = vpop.f32.mrf.mxu0
      %v1000 = vadd.f32 0.0, %v999
      %v1001 = vpop.f32.mrf.mxu0
      %v1002 = vpop.f32.mrf.mxu0
      %1003 = vdwg.mxu0
      %v1004 = vadd.f32 %v584, %v988
      %v1005 = vadd.f32 %v586, %v990
      %v1006 = vadd.f32 %v588, %v992
      %v1007 = vadd.f32 %v590, %v994
      %v1008 = vadd.f32 %v594, %v998
      %v1009 = vadd.f32 %v596, %v1000
      %s1010 = scalar_lea.vmem %s2, 84
      %v1011 = vld [vmem:[%s1010] sm:$0xf]
      %v1012 = vld [vmem:[%s1010 + $0x4] sm:$0xf]
      %v1013 = vld [vmem:[%s1010 + $0x8] sm:$0xf]
      %v1017 = vunpack.c.l.b16 %v1011
      %v1018 = vunpack.c.l.b16 %v1012
      %v1019 = vunpack.c.l.b16 %v1013
      %v1020 = vpack.c.b16 %v1018, %v1017
      %v1021 = vpack.c.b16 %v1019, %v1019
      %1022 = vrot.lane.b32.xlu0 %v732, 112
      %v1023 = vpop.permute.xlu0 %1022
      %1024 = vrot.lane.b32.xlu0 %v733, 112
      %v1025 = vpop.permute.xlu0 %1024
      %1026 = vrot.lane.b32.xlu0 %v734, 112
      %v1027 = vpop.permute.xlu0 %1026
      %1028 = vrot.lane.b32.xlu0 %v735, 112
      %v1029 = vpop.permute.xlu0 %1028
      %1030 = vrot.lane.b32.xlu0 %v736, 112
      %v1031 = vpop.permute.xlu0 %1030
      %1032 = vrot.lane.b32.xlu0 %v737, 112
      %v1033 = vpop.permute.xlu0 %1032
      %vm1034 = vcmask 916480
      %v1035 = vsel %vm1034, %v1023, %v1025
      %v1036 = vsel %vm1034, %v1025, %v1027
      %v1037 = vsel %vm1034, %v1029, %v1031
      %v1038 = vsel %vm1034, %v1031, %v1033
      %v1042 = vsel %vm341, %v1020, 0
      %v1045 = vsel %vm341, %v1021, 0
      %v1048 = vsel %vm348, %v1037, 0
      %v1051 = vsel %vm348, %v1038, 0
      %1053 = vmatprep.subr.bf16.mxu0 0
      %1054 = vmatpush1.bf16.msra.mxu0 0
      %1055 = vmatprep.subr.bf16.mxu0 0
      %1056 = vmatpush1.bf16.msra.mxu0 0
      %1057 = vmatprep.subr.bf16.mxu0 0
      %1058 = vmatpush1.bf16.msra.mxu0 0
      %1059 = vmatprep.subr.bf16.mxu0 0
      %1060 = vmatpush1.bf16.msra.mxu0 0
      %1061 = vmatprep.subr.bf16.mxu0 0
      %1062 = vmatpush1.bf16.msra.mxu0 0
      %1063 = vmatprep.subr.bf16.mxu0 0
      %1064 = vmatpush1.bf16.msra.mxu0 0
      %1065 = vmatprep.subr.bf16.mxu0 %v1051
      %1066 = vmatpush1.bf16.msra.mxu0 %v1048
      %1067 = vmatprep.subr.bf16.mxu0 %v1036
      %1068 = vmatpush1.bf16.msra.mxu0 %v1035
      %1069 = vmatprep.subr.bf16.mxu0 0
      %1070 = vmatpush2.bf16.msra.mxu0 0
      %1071 = vmatprep.subr.bf16.mxu0 0
      %1072 = vmatpush2.bf16.msra.mxu0 0
      %1073 = vmatprep.subr.bf16.mxu0 0
      %1074 = vmatpush2.bf16.msra.mxu0 0
      %1075 = vmatprep.subr.bf16.mxu0 0
      %1076 = vmatpush2.bf16.msra.mxu0 0
      %1077 = vmatprep.subr.bf16.mxu0 0
      %1078 = vmatpush2.bf16.msra.mxu0 0
      %1079 = vmatprep.subr.bf16.mxu0 0
      %1080 = vmatpush2.bf16.msra.mxu0 0
      %1081 = vmatprep.subr.bf16.mxu0 0
      %1082 = vmatpush2.bf16.msra.mxu0 0
      %1083 = vmatprep.subr.bf16.mxu0 0
      %1084 = vmatpush2.bf16.msra.mxu0 0
      %1085 = vmatprep.mubr.bf16.mxu0 0
      %1086 = vmatmul.mubr.bf16.gmra.mxu0 %v1042
      %v1087 = vpop.f32.mrf.mxu0
      %v1088 = vadd.f32 0.0, %v1087
      %v1089 = vpop.f32.mrf.mxu0
      %v1090 = vadd.f32 0.0, %v1089
      %v1091 = vpop.f32.mrf.mxu0
      %v1092 = vadd.f32 0.0, %v1091
      %v1093 = vpop.f32.mrf.mxu0
      %v1094 = vadd.f32 0.0, %v1093
      %1095 = vmatprep.mubr.bf16.mxu0 0
      %1096 = vmatmul.mubr.bf16.gmra.mxu0 %v1045
      %v1097 = vpop.f32.mrf.mxu0
      %v1098 = vadd.f32 0.0, %v1097
      %v1099 = vpop.f32.mrf.mxu0
      %v1100 = vadd.f32 0.0, %v1099
      %v1101 = vpop.f32.mrf.mxu0
      %v1102 = vpop.f32.mrf.mxu0
      %1103 = vdwg.mxu0
      %v1104 = vadd.f32 %v693, %v1088
      %v1105 = vadd.f32 %v694, %v1090
      %v1106 = vadd.f32 %v695, %v1092
      %v1107 = vadd.f32 %v696, %v1094
      %v1108 = vadd.f32 %v697, %v1098
      %v1109 = vadd.f32 %v698, %v1100
      %s1110 = scalar_lea.vmem %s2, 96
      %v1111 = vld [vmem:[%s1110] sm:$0xf]
      %v1112 = vld [vmem:[%s1110 + $0x4] sm:$0xf]
      %v1113 = vld [vmem:[%s1110 + $0x8] sm:$0xf]
      %v1117 = vunpack.c.l.b16 %v1111
      %v1118 = vunpack.c.l.b16 %v1112
      %v1119 = vunpack.c.l.b16 %v1113
      %v1120 = vpack.c.b16 %v1118, %v1117
      %v1121 = vpack.c.b16 %v1119, %v1119
      %1122 = vrot.lane.b32.xlu0 %v732, 111
      %v1123 = vpop.permute.xlu0 %1122
      %1124 = vrot.lane.b32.xlu0 %v733, 111
      %v1125 = vpop.permute.xlu0 %1124
      %1126 = vrot.lane.b32.xlu0 %v734, 111
      %v1127 = vpop.permute.xlu0 %1126
      %1128 = vrot.lane.b32.xlu0 %v735, 111
      %v1129 = vpop.permute.xlu0 %1128
      %1130 = vrot.lane.b32.xlu0 %v736, 111
      %v1131 = vpop.permute.xlu0 %1130
      %1132 = vrot.lane.b32.xlu0 %v737, 111
      %v1133 = vpop.permute.xlu0 %1132
      %vm1134 = vcmask 908288
      %v1135 = vsel %vm1134, %v1123, %v1125
      %v1136 = vsel %vm1134, %v1125, %v1127
      %v1137 = vsel %vm1134, %v1129, %v1131
      %v1138 = vsel %vm1134, %v1131, %v1133
      %v1142 = vsel %vm341, %v1120, 0
      %v1145 = vsel %vm341, %v1121, 0
      %v1148 = vsel %vm348, %v1137, 0
      %v1151 = vsel %vm348, %v1138, 0
      %1153 = vmatprep.subr.bf16.mxu0 0
      %1154 = vmatpush1.bf16.msra.mxu0 0
      %1155 = vmatprep.subr.bf16.mxu0 0
      %1156 = vmatpush1.bf16.msra.mxu0 0
      %1157 = vmatprep.subr.bf16.mxu0 0
      %1158 = vmatpush1.bf16.msra.mxu0 0
      %1159 = vmatprep.subr.bf16.mxu0 0
      %1160 = vmatpush1.bf16.msra.mxu0 0
      %1161 = vmatprep.subr.bf16.mxu0 0
      %1162 = vmatpush1.bf16.msra.mxu0 0
      %1163 = vmatprep.subr.bf16.mxu0 0
      %1164 = vmatpush1.bf16.msra.mxu0 0
      %1165 = vmatprep.subr.bf16.mxu0 %v1151
      %1166 = vmatpush1.bf16.msra.mxu0 %v1148
      %1167 = vmatprep.subr.bf16.mxu0 %v1136
      %1168 = vmatpush1.bf16.msra.mxu0 %v1135
      %1169 = vmatprep.subr.bf16.mxu0 0
      %1170 = vmatpush2.bf16.msra.mxu0 0
      %1171 = vmatprep.subr.bf16.mxu0 0
      %1172 = vmatpush2.bf16.msra.mxu0 0
      %1173 = vmatprep.subr.bf16.mxu0 0
      %1174 = vmatpush2.bf16.msra.mxu0 0
      %1175 = vmatprep.subr.bf16.mxu0 0
      %1176 = vmatpush2.bf16.msra.mxu0 0
      %1177 = vmatprep.subr.bf16.mxu0 0
      %1178 = vmatpush2.bf16.msra.mxu0 0
      %1179 = vmatprep.subr.bf16.mxu0 0
      %1180 = vmatpush2.bf16.msra.mxu0 0
      %1181 = vmatprep.subr.bf16.mxu0 0
      %1182 = vmatpush2.bf16.msra.mxu0 0
      %1183 = vmatprep.subr.bf16.mxu0 0
      %1184 = vmatpush2.bf16.msra.mxu0 0
      %1185 = vmatprep.mubr.bf16.mxu0 0
      %1186 = vmatmul.mubr.bf16.gmra.mxu0 %v1142
      %v1187 = vpop.f32.mrf.mxu0
      %v1188 = vadd.f32 0.0, %v1187
      %v1189 = vpop.f32.mrf.mxu0
      %v1190 = vadd.f32 0.0, %v1189
      %v1191 = vpop.f32.mrf.mxu0
      %v1192 = vadd.f32 0.0, %v1191
      %v1193 = vpop.f32.mrf.mxu0
      %v1194 = vadd.f32 0.0, %v1193
      %1195 = vmatprep.mubr.bf16.mxu0 0
      %1196 = vmatmul.mubr.bf16.gmra.mxu0 %v1145
      %v1197 = vpop.f32.mrf.mxu0
      %v1198 = vadd.f32 0.0, %v1197
      %v1199 = vpop.f32.mrf.mxu0
      %v1200 = vadd.f32 0.0, %v1199
      %v1201 = vpop.f32.mrf.mxu0
      %v1202 = vpop.f32.mrf.mxu0
      %1203 = vdwg.mxu0
      %v1204 = vadd.f32 %v894, %v1188
      %v1205 = vadd.f32 %v896, %v1190
      %v1206 = vadd.f32 %v898, %v1192
      %v1207 = vadd.f32 %v900, %v1194
      %v1208 = vadd.f32 %v904, %v1198
      %v1209 = vadd.f32 %v906, %v1200
      %v1211 = vlaneseq
      %v1212 = vshrl.u32 %v1211, 7
      %v1213 = vsub.s32 0, %v1212
      %v1214 = vrot.slane %v253, %v1213
      %v1215 = vlaneseq
      %v1216 = vshrl.u32 %v1215, 7
      %v1217 = vsub.s32 1, %v1216
      %v1218 = vrot.slane %v253, %v1217
      %v1221 = vmul.f32 %v1004, %v1214
      %v1222 = vmul.f32 %v1005, %v1218
      %v1223 = vmul.f32 %v1006, %v1214
      %v1224 = vmul.f32 %v1007, %v1218
      %v1225 = vmul.f32 %v1008, %v1214
      %v1226 = vmul.f32 %v1009, %v1218
      %v1227 = vadd.f32 %v1104, %v1221
      %v1228 = vadd.f32 %v1105, %v1222
      %v1229 = vadd.f32 %v1106, %v1223
      %v1230 = vadd.f32 %v1107, %v1224
      %v1231 = vadd.f32 %v1108, %v1225
      %v1232 = vadd.f32 %v1109, %v1226
      %v1234 = vlaneseq
      %v1235 = vshrl.u32 %v1234, 7
      %v1236 = vsub.s32 0, %v1235
      %v1237 = vrot.slane %v255, %v1236
      %v1238 = vlaneseq
      %v1239 = vshrl.u32 %v1238, 7
      %v1240 = vsub.s32 1, %v1239
      %v1241 = vrot.slane %v255, %v1240
      %v1244 = vmul.f32 %v1204, %v1237
      %v1245 = vmul.f32 %v1205, %v1241
      %v1246 = vmul.f32 %v1206, %v1237
      %v1247 = vmul.f32 %v1207, %v1241
      %v1248 = vmul.f32 %v1208, %v1237
      %v1249 = vmul.f32 %v1209, %v1241
      %v1250 = vadd.f32 %v1227, %v1244
      %v1251 = vadd.f32 %v1228, %v1245
      %v1252 = vadd.f32 %v1229, %v1246
      %v1253 = vadd.f32 %v1230, %v1247
      %v1254 = vadd.f32 %v1231, %v1248
      %v1255 = vadd.f32 %v1232, %v1249
      %v1256 = vmax.f32 %v1250, 0.0
      %v1257 = vmax.f32 %v1251, 0.0
      %v1258 = vmax.f32 %v1252, 0.0
      %v1259 = vmax.f32 %v1253, 0.0
      %v1260 = vmax.f32 %v1254, 0.0
      %v1261 = vmax.f32 %v1255, 0.0
      %v1262 = vpack.c.bf16 %v1258, %v1256
      %v1263 = vpack.c.bf16 %v1259, %v1257
      %v1264 = vpack.c.bf16 %v1260, %v1260
      %v1265 = vpack.c.bf16 %v1261, %v1261
      %v1270 = vunpack.c.l.b16 %v1262
      %v1271 = vunpack.c.l.b16 %v1263
      %v1272 = vunpack.c.h.b16 %v1262
      %v1273 = vunpack.c.h.b16 %v1263
      %v1274 = vunpack.c.l.b16 %v1264
      %v1275 = vunpack.c.l.b16 %v1265
      %v1276 = vpack.c.b16 %v1271, %v1270
      %v1277 = vpack.c.b16 %v1273, %v1272
      %v1278 = vpack.c.b16 %v1275, %v1274
      %1282 = vst [vmem:[#allocation2 + $0x4] sm:$0xff] %v1276
      %1283 = vst [vmem:[#allocation2 + $0x14] sm:$0xff] %v1277
      %1284 = vst [vmem:[#allocation2 + $0x24] sm:$0xff] %v1278
      %v1285 = vld [vmem:[%s246 + $0x20] sm:$0xee]
      %v1286 = vld [vmem:[%s246 + $0x28] sm:$0xee]
      %v1287 = vld [vmem:[%s246 + $0x30] sm:$0x11]
      %v1288 = vld [vmem:[%s246 + $0x38] sm:$0x11]
      %vm1293 = vcmask 1042432
      %vm1294 = vcmask 1046532
      %vm1295 = vmor %vm1293, %vm1294
      %v1296 = vrot.slane %v1285, 5
      %v1297 = vrot.slane %v1296, 4
      %v1298 = vrot.slane %v1287, 5
      %v1299 = vsel %vm1295, %v1297, %v1298
      %v1300 = vrot.slane %v1286, 5
      %v1301 = vrot.slane %v1300, 4
      %v1302 = vrot.slane %v1288, 5
      %v1303 = vsel %vm1295, %v1301, %v1302
      %1306 = vst [vmem:[#allocation2 + $0x30] sm:$0xff] %v1299
      %1307 = vst [vmem:[#allocation2 + $0x38] sm:$0xff] %v1303
      %v1308 = vld [vmem:[%s5] sm:$0xff]
      %1310 = vset.pattern.permute.xlu0 0
      %1311 = vperm.xlu0 %1310, %v1308
      %v1312 = vpop.permute.xlu0 %1311
      %v1314 = vld [vmem:[%s3] sm:$0xf]
      %v1315 = vld [vmem:[#allocation2] sm:$0xff]
      %v1316 = vld [vmem:[#allocation2 + $0x8] sm:$0xf]
      %v1317 = vld [vmem:[#allocation2 + $0x10] sm:$0xff]
      %v1318 = vld [vmem:[#allocation2 + $0x18] sm:$0xf]
      %v1319 = vld [vmem:[#allocation2 + $0x20] sm:$0xff]
      %v1320 = vld [vmem:[#allocation2 + $0x28] sm:$0xf]
      %v1321 = vld [vmem:[#allocation2 + $0x30] sm:$0xff]
      %v1322 = vld [vmem:[#allocation2 + $0x38] sm:$0xf]
      %s1323 = scalar_lea.vmem %s3, 4
      %v1324 = vld [vmem:[%s1323] sm:$0xf]
      %v1333 = vunpack.c.l.b16 %v1315
      %v1334 = vunpack.c.h.b16 %v1315
      %v1335 = vunpack.c.l.b16 %v1316
      %v1336 = vunpack.c.l.b16 %v1317
      %v1337 = vunpack.c.h.b16 %v1317
      %v1338 = vunpack.c.l.b16 %v1318
      %v1339 = vunpack.c.l.b16 %v1319
      %v1340 = vunpack.c.h.b16 %v1319
      %v1341 = vunpack.c.l.b16 %v1320
      %v1342 = vunpack.c.l.b16 %v1321
      %v1343 = vunpack.c.h.b16 %v1321
      %v1344 = vunpack.c.l.b16 %v1322
      %v1345 = vpack.c.b16 %v1336, %v1333
      %v1346 = vpack.c.b16 %v1337, %v1334
      %v1347 = vpack.c.b16 %v1338, %v1335
      %v1348 = vpack.c.b16 %v1342, %v1339
      %v1349 = vpack.c.b16 %v1343, %v1340
      %v1350 = vpack.c.b16 %v1344, %v1341
      %1351 = vrot.lane.b32.xlu0 %v1345, 16
      %v1352 = vpop.permute.xlu0 %1351
      %1353 = vrot.lane.b32.xlu0 %v1346, 16
      %v1354 = vpop.permute.xlu0 %1353
      %1355 = vrot.lane.b32.xlu0 %v1347, 16
      %v1356 = vpop.permute.xlu0 %1355
      %1357 = vrot.lane.b32.xlu0 %v1348, 16
      %v1358 = vpop.permute.xlu0 %1357
      %1359 = vrot.lane.b32.xlu0 %v1349, 16
      %v1360 = vpop.permute.xlu0 %1359
      %1361 = vrot.lane.b32.xlu0 %v1350, 16
      %v1362 = vpop.permute.xlu0 %1361
      %v1363 = vsel %vm334, %v1352, %v1354
      %v1364 = vsel %vm334, %v1354, %v1356
      %v1365 = vsel %vm334, %v1358, %v1360
      %v1366 = vsel %vm334, %v1360, %v1362
      %vm1371 = vcmask 261120
      %v1373 = vsel %vm1371, %v1324, 0
      %1375 = vmatprep.subr.bf16.mxu0 0
      %1376 = vmatpush1.bf16.msra.mxu0 0
      %1377 = vmatprep.subr.bf16.mxu0 0
      %1378 = vmatpush1.bf16.msra.mxu0 0
      %1379 = vmatprep.subr.bf16.mxu0 0
      %1380 = vmatpush1.bf16.msra.mxu0 0
      %1381 = vmatprep.subr.bf16.mxu0 0
      %1382 = vmatpush1.bf16.msra.mxu0 0
      %1383 = vmatprep.subr.bf16.mxu0 0
      %1384 = vmatpush1.bf16.msra.mxu0 0
      %1385 = vmatprep.subr.bf16.mxu0 0
      %1386 = vmatpush1.bf16.msra.mxu0 0
      %1387 = vmatprep.subr.bf16.mxu0 %v1366
      %1388 = vmatpush1.bf16.msra.mxu0 %v1365
      %1389 = vmatprep.subr.bf16.mxu0 %v1364
      %1390 = vmatpush1.bf16.msra.mxu0 %v1363
      %1391 = vmatprep.subr.bf16.mxu0 0
      %1392 = vmatpush2.bf16.msra.mxu0 0
      %1393 = vmatprep.subr.bf16.mxu0 0
      %1394 = vmatpush2.bf16.msra.mxu0 0
      %1395 = vmatprep.subr.bf16.mxu0 0
      %1396 = vmatpush2.bf16.msra.mxu0 0
      %1397 = vmatprep.subr.bf16.mxu0 0
      %1398 = vmatpush2.bf16.msra.mxu0 0
      %1399 = vmatprep.subr.bf16.mxu0 0
      %1400 = vmatpush2.bf16.msra.mxu0 0
      %1401 = vmatprep.subr.bf16.mxu0 0
      %1402 = vmatpush2.bf16.msra.mxu0 0
      %1403 = vmatprep.subr.bf16.mxu0 0
      %1404 = vmatpush2.bf16.msra.mxu0 0
      %1405 = vmatprep.subr.bf16.mxu0 0
      %1406 = vmatpush2.bf16.msra.mxu0 0
      %1407 = vmatprep.mubr.bf16.mxu0 0
      %1408 = vmatmul.mubr.bf16.gmra.mxu0 %v1373
      %v1409 = vpop.f32.mrf.mxu0
      %v1410 = vadd.f32 0.0, %v1409
      %v1411 = vpop.f32.mrf.mxu0
      %v1412 = vadd.f32 0.0, %v1411
      %v1413 = vpop.f32.mrf.mxu0
      %v1414 = vpop.f32.mrf.mxu0
      %1415 = vdwg.mxu0
      %v1416 = vadd.f32 %v1312, %v1410
      %v1417 = vadd.f32 %v1312, %v1412
      %s1418 = scalar_lea.vmem %s3, 8
      %v1419 = vld [vmem:[%s1418] sm:$0xf]
      %s1420 = scalar_lea.vmem %s3, 12
      %v1421 = vld [vmem:[%s1420] sm:$0xf]
      %1422 = vrot.lane.b32.xlu0 %v1345, 1
      %v1423 = vpop.permute.xlu0 %1422
      %1424 = vrot.lane.b32.xlu0 %v1346, 1
      %v1425 = vpop.permute.xlu0 %1424
      %1426 = vrot.lane.b32.xlu0 %v1347, 1
      %v1427 = vpop.permute.xlu0 %1426
      %1428 = vrot.lane.b32.xlu0 %v1348, 1
      %v1429 = vpop.permute.xlu0 %1428
      %1430 = vrot.lane.b32.xlu0 %v1349, 1
      %v1431 = vpop.permute.xlu0 %1430
      %1432 = vrot.lane.b32.xlu0 %v1350, 1
      %v1433 = vpop.permute.xlu0 %1432
      %v1434 = vsel %vm440, %v1423, %v1425
      %v1435 = vsel %vm440, %v1425, %v1427
      %v1436 = vsel %vm440, %v1429, %v1431
      %v1437 = vsel %vm440, %v1431, %v1433
      %v1443 = vsel %vm1371, %v1421, 0
      %1445 = vmatprep.subr.bf16.mxu0 0
      %1446 = vmatpush1.bf16.msra.mxu0 0
      %1447 = vmatprep.subr.bf16.mxu0 0
      %1448 = vmatpush1.bf16.msra.mxu0 0
      %1449 = vmatprep.subr.bf16.mxu0 0
      %1450 = vmatpush1.bf16.msra.mxu0 0
      %1451 = vmatprep.subr.bf16.mxu0 0
      %1452 = vmatpush1.bf16.msra.mxu0 0
      %1453 = vmatprep.subr.bf16.mxu0 0
      %1454 = vmatpush1.bf16.msra.mxu0 0
      %1455 = vmatprep.subr.bf16.mxu0 0
      %1456 = vmatpush1.bf16.msra.mxu0 0
      %1457 = vmatprep.subr.bf16.mxu0 %v1437
      %1458 = vmatpush1.bf16.msra.mxu0 %v1436
      %1459 = vmatprep.subr.bf16.mxu0 %v1435
      %1460 = vmatpush1.bf16.msra.mxu0 %v1434
      %1461 = vmatprep.subr.bf16.mxu0 0
      %1462 = vmatpush2.bf16.msra.mxu0 0
      %1463 = vmatprep.subr.bf16.mxu0 0
      %1464 = vmatpush2.bf16.msra.mxu0 0
      %1465 = vmatprep.subr.bf16.mxu0 0
      %1466 = vmatpush2.bf16.msra.mxu0 0
      %1467 = vmatprep.subr.bf16.mxu0 0
      %1468 = vmatpush2.bf16.msra.mxu0 0
      %1469 = vmatprep.subr.bf16.mxu0 0
      %1470 = vmatpush2.bf16.msra.mxu0 0
      %1471 = vmatprep.subr.bf16.mxu0 0
      %1472 = vmatpush2.bf16.msra.mxu0 0
      %1473 = vmatprep.subr.bf16.mxu0 0
      %1474 = vmatpush2.bf16.msra.mxu0 0
      %1475 = vmatprep.subr.bf16.mxu0 0
      %1476 = vmatpush2.bf16.msra.mxu0 0
      %1477 = vmatprep.mubr.bf16.mxu0 0
      %1478 = vmatmul.mubr.bf16.gmra.mxu0 %v1443
      %v1479 = vpop.f32.mrf.mxu0
      %v1480 = vadd.f32 0.0, %v1479
      %v1481 = vpop.f32.mrf.mxu0
      %v1482 = vadd.f32 0.0, %v1481
      %v1483 = vpop.f32.mrf.mxu0
      %v1484 = vpop.f32.mrf.mxu0
      %1485 = vdwg.mxu0
      %1486 = vrot.lane.b32.xlu0 %v1345, 17
      %v1487 = vpop.permute.xlu0 %1486
      %1488 = vrot.lane.b32.xlu0 %v1346, 17
      %v1489 = vpop.permute.xlu0 %1488
      %1490 = vrot.lane.b32.xlu0 %v1347, 17
      %v1491 = vpop.permute.xlu0 %1490
      %1492 = vrot.lane.b32.xlu0 %v1348, 17
      %v1493 = vpop.permute.xlu0 %1492
      %1494 = vrot.lane.b32.xlu0 %v1349, 17
      %v1495 = vpop.permute.xlu0 %1494
      %1496 = vrot.lane.b32.xlu0 %v1350, 17
      %v1497 = vpop.permute.xlu0 %1496
      %v1498 = vsel %vm530, %v1487, %v1489
      %v1499 = vsel %vm530, %v1489, %v1491
      %v1500 = vsel %vm530, %v1493, %v1495
      %v1501 = vsel %vm530, %v1495, %v1497
      %v1507 = vsel %vm1371, %v1314, 0
      %1509 = vmatprep.subr.bf16.mxu0 0
      %1510 = vmatpush1.bf16.msra.mxu0 0
      %1511 = vmatprep.subr.bf16.mxu0 0
      %1512 = vmatpush1.bf16.msra.mxu0 0
      %1513 = vmatprep.subr.bf16.mxu0 0
      %1514 = vmatpush1.bf16.msra.mxu0 0
      %1515 = vmatprep.subr.bf16.mxu0 0
      %1516 = vmatpush1.bf16.msra.mxu0 0
      %1517 = vmatprep.subr.bf16.mxu0 0
      %1518 = vmatpush1.bf16.msra.mxu0 0
      %1519 = vmatprep.subr.bf16.mxu0 0
      %1520 = vmatpush1.bf16.msra.mxu0 0
      %1521 = vmatprep.subr.bf16.mxu0 %v1501
      %1522 = vmatpush1.bf16.msra.mxu0 %v1500
      %1523 = vmatprep.subr.bf16.mxu0 %v1499
      %1524 = vmatpush1.bf16.msra.mxu0 %v1498
      %1525 = vmatprep.subr.bf16.mxu0 0
      %1526 = vmatpush2.bf16.msra.mxu0 0
      %1527 = vmatprep.subr.bf16.mxu0 0
      %1528 = vmatpush2.bf16.msra.mxu0 0
      %1529 = vmatprep.subr.bf16.mxu0 0
      %1530 = vmatpush2.bf16.msra.mxu0 0
      %1531 = vmatprep.subr.bf16.mxu0 0
      %1532 = vmatpush2.bf16.msra.mxu0 0
      %1533 = vmatprep.subr.bf16.mxu0 0
      %1534 = vmatpush2.bf16.msra.mxu0 0
      %1535 = vmatprep.subr.bf16.mxu0 0
      %1536 = vmatpush2.bf16.msra.mxu0 0
      %1537 = vmatprep.subr.bf16.mxu0 0
      %1538 = vmatpush2.bf16.msra.mxu0 0
      %1539 = vmatprep.subr.bf16.mxu0 0
      %1540 = vmatpush2.bf16.msra.mxu0 0
      %1541 = vmatprep.mubr.bf16.mxu0 0
      %1542 = vmatmul.mubr.bf16.gmra.mxu0 %v1507
      %v1543 = vpop.f32.mrf.mxu0
      %v1544 = vadd.f32 %v1480, %v1543
      %v1545 = vpop.f32.mrf.mxu0
      %v1546 = vadd.f32 %v1482, %v1545
      %v1547 = vpop.f32.mrf.mxu0
      %v1548 = vpop.f32.mrf.mxu0
      %1549 = vdwg.mxu0
      %s1550 = scalar_lea.vmem %s3, 16
      %v1551 = vld [vmem:[%s1550] sm:$0xf]
      %v1552 = vld [vmem:[#allocation2 + $0x4] sm:$0xff]
      %v1553 = vld [vmem:[#allocation2 + $0x14] sm:$0xff]
      %v1554 = vld [vmem:[#allocation2 + $0x24] sm:$0xff]
      %v1555 = vld [vmem:[#allocation2 + $0x34] sm:$0xff]
      %v1560 = vunpack.c.l.b16 %v1552
      %v1561 = vunpack.c.h.b16 %v1552
      %v1562 = vunpack.c.l.b16 %v1553
      %v1563 = vunpack.c.h.b16 %v1553
      %v1564 = vunpack.c.l.b16 %v1554
      %v1565 = vunpack.c.h.b16 %v1554
      %v1566 = vunpack.c.l.b16 %v1555
      %v1567 = vunpack.c.h.b16 %v1555
      %v1568 = vpack.c.b16 %v1562, %v1560
      %v1569 = vpack.c.b16 %v1563, %v1561
      %v1570 = vpack.c.b16 %v1566, %v1564
      %v1571 = vpack.c.b16 %v1567, %v1565
      %v1577 = vsel %vm1371, %v1551, 0
      %1579 = vmatprep.subr.bf16.mxu0 0
      %1580 = vmatpush1.bf16.msra.mxu0 0
      %1581 = vmatprep.subr.bf16.mxu0 0
      %1582 = vmatpush1.bf16.msra.mxu0 0
      %1583 = vmatprep.subr.bf16.mxu0 0
      %1584 = vmatpush1.bf16.msra.mxu0 0
      %1585 = vmatprep.subr.bf16.mxu0 0
      %1586 = vmatpush1.bf16.msra.mxu0 0
      %1587 = vmatprep.subr.bf16.mxu0 0
      %1588 = vmatpush1.bf16.msra.mxu0 0
      %1589 = vmatprep.subr.bf16.mxu0 0
      %1590 = vmatpush1.bf16.msra.mxu0 0
      %1591 = vmatprep.subr.bf16.mxu0 %v1571
      %1592 = vmatpush1.bf16.msra.mxu0 %v1570
      %1593 = vmatprep.subr.bf16.mxu0 %v1569
      %1594 = vmatpush1.bf16.msra.mxu0 %v1568
      %1595 = vmatprep.subr.bf16.mxu0 0
      %1596 = vmatpush2.bf16.msra.mxu0 0
      %1597 = vmatprep.subr.bf16.mxu0 0
      %1598 = vmatpush2.bf16.msra.mxu0 0
      %1599 = vmatprep.subr.bf16.mxu0 0
      %1600 = vmatpush2.bf16.msra.mxu0 0
      %1601 = vmatprep.subr.bf16.mxu0 0
      %1602 = vmatpush2.bf16.msra.mxu0 0
      %1603 = vmatprep.subr.bf16.mxu0 0
      %1604 = vmatpush2.bf16.msra.mxu0 0
      %1605 = vmatprep.subr.bf16.mxu0 0
      %1606 = vmatpush2.bf16.msra.mxu0 0
      %1607 = vmatprep.subr.bf16.mxu0 0
      %1608 = vmatpush2.bf16.msra.mxu0 0
      %1609 = vmatprep.subr.bf16.mxu0 0
      %1610 = vmatpush2.bf16.msra.mxu0 0
      %1611 = vmatprep.mubr.bf16.mxu0 0
      %1612 = vmatmul.mubr.bf16.gmra.mxu0 %v1577
      %v1613 = vpop.f32.mrf.mxu0
      %v1614 = vadd.f32 0.0, %v1613
      %v1615 = vpop.f32.mrf.mxu0
      %v1616 = vadd.f32 0.0, %v1615
      %v1617 = vpop.f32.mrf.mxu0
      %v1618 = vpop.f32.mrf.mxu0
      %1619 = vdwg.mxu0
      %v1620 = vadd.f32 %v1416, %v1614
      %v1621 = vadd.f32 %v1417, %v1616
      %s1622 = scalar_lea.vmem %s3, 20
      %v1623 = vld [vmem:[%s1622] sm:$0xf]
      %v1624 = vld [vmem:[#allocation2 + $0x4] sm:$0xff]
      %v1625 = vld [vmem:[#allocation2 + $0xc] sm:$0xf]
      %v1626 = vld [vmem:[#allocation2 + $0x14] sm:$0xff]
      %v1627 = vld [vmem:[#allocation2 + $0x1c] sm:$0xf]
      %v1628 = vld [vmem:[#allocation2 + $0x24] sm:$0xff]
      %v1629 = vld [vmem:[#allocation2 + $0x2c] sm:$0xf]
      %v1630 = vld [vmem:[#allocation2 + $0x34] sm:$0xff]
      %v1631 = vld [vmem:[#allocation2 + $0x3c] sm:$0xf]
      %v1640 = vunpack.c.l.b16 %v1624
      %v1641 = vunpack.c.h.b16 %v1624
      %v1642 = vunpack.c.l.b16 %v1625
      %v1643 = vunpack.c.l.b16 %v1626
      %v1644 = vunpack.c.h.b16 %v1626
      %v1645 = vunpack.c.l.b16 %v1627
      %v1646 = vunpack.c.l.b16 %v1628
      %v1647 = vunpack.c.h.b16 %v1628
      %v1648 = vunpack.c.l.b16 %v1629
      %v1649 = vunpack.c.l.b16 %v1630
      %v1650 = vunpack.c.h.b16 %v1630
      %v1651 = vunpack.c.l.b16 %v1631
      %v1652 = vpack.c.b16 %v1643, %v1640
      %v1653 = vpack.c.b16 %v1644, %v1641
      %v1654 = vpack.c.b16 %v1645, %v1642
      %v1655 = vpack.c.b16 %v1649, %v1646
      %v1656 = vpack.c.b16 %v1650, %v1647
      %v1657 = vpack.c.b16 %v1651, %v1648
      %1658 = vrot.lane.b32.xlu0 %v1652, 127
      %v1659 = vpop.permute.xlu0 %1658
      %1660 = vrot.lane.b32.xlu0 %v1653, 127
      %v1661 = vpop.permute.xlu0 %1660
      %1662 = vrot.lane.b32.xlu0 %v1654, 127
      %v1663 = vpop.permute.xlu0 %1662
      %1664 = vrot.lane.b32.xlu0 %v1655, 127
      %v1665 = vpop.permute.xlu0 %1664
      %1666 = vrot.lane.b32.xlu0 %v1656, 127
      %v1667 = vpop.permute.xlu0 %1666
      %1668 = vrot.lane.b32.xlu0 %v1657, 127
      %v1669 = vpop.permute.xlu0 %1668
      %v1670 = vsel %vm750, %v1659, %v1661
      %v1671 = vsel %vm750, %v1661, %v1663
      %v1672 = vsel %vm750, %v1665, %v1667
      %v1673 = vsel %vm750, %v1667, %v1669
      %v1679 = vsel %vm1371, %v1623, 0
      %1681 = vmatprep.subr.bf16.mxu0 0
      %1682 = vmatpush1.bf16.msra.mxu0 0
      %1683 = vmatprep.subr.bf16.mxu0 0
      %1684 = vmatpush1.bf16.msra.mxu0 0
      %1685 = vmatprep.subr.bf16.mxu0 0
      %1686 = vmatpush1.bf16.msra.mxu0 0
      %1687 = vmatprep.subr.bf16.mxu0 0
      %1688 = vmatpush1.bf16.msra.mxu0 0
      %1689 = vmatprep.subr.bf16.mxu0 0
      %1690 = vmatpush1.bf16.msra.mxu0 0
      %1691 = vmatprep.subr.bf16.mxu0 0
      %1692 = vmatpush1.bf16.msra.mxu0 0
      %1693 = vmatprep.subr.bf16.mxu0 %v1673
      %1694 = vmatpush1.bf16.msra.mxu0 %v1672
      %1695 = vmatprep.subr.bf16.mxu0 %v1671
      %1696 = vmatpush1.bf16.msra.mxu0 %v1670
      %1697 = vmatprep.subr.bf16.mxu0 0
      %1698 = vmatpush2.bf16.msra.mxu0 0
      %1699 = vmatprep.subr.bf16.mxu0 0
      %1700 = vmatpush2.bf16.msra.mxu0 0
      %1701 = vmatprep.subr.bf16.mxu0 0
      %1702 = vmatpush2.bf16.msra.mxu0 0
      %1703 = vmatprep.subr.bf16.mxu0 0
      %1704 = vmatpush2.bf16.msra.mxu0 0
      %1705 = vmatprep.subr.bf16.mxu0 0
      %1706 = vmatpush2.bf16.msra.mxu0 0
      %1707 = vmatprep.subr.bf16.mxu0 0
      %1708 = vmatpush2.bf16.msra.mxu0 0
      %1709 = vmatprep.subr.bf16.mxu0 0
      %1710 = vmatpush2.bf16.msra.mxu0 0
      %1711 = vmatprep.subr.bf16.mxu0 0
      %1712 = vmatpush2.bf16.msra.mxu0 0
      %1713 = vmatprep.mubr.bf16.mxu0 0
      %1714 = vmatmul.mubr.bf16.gmra.mxu0 %v1679
      %v1715 = vpop.f32.mrf.mxu0
      %v1716 = vadd.f32 0.0, %v1715
      %v1717 = vpop.f32.mrf.mxu0
      %v1718 = vadd.f32 0.0, %v1717
      %v1719 = vpop.f32.mrf.mxu0
      %v1720 = vpop.f32.mrf.mxu0
      %1721 = vdwg.mxu0
      %1722 = vrot.lane.b32.xlu0 %v1345, 15
      %v1723 = vpop.permute.xlu0 %1722
      %1724 = vrot.lane.b32.xlu0 %v1346, 15
      %v1725 = vpop.permute.xlu0 %1724
      %1726 = vrot.lane.b32.xlu0 %v1347, 15
      %v1727 = vpop.permute.xlu0 %1726
      %1728 = vrot.lane.b32.xlu0 %v1348, 15
      %v1729 = vpop.permute.xlu0 %1728
      %1730 = vrot.lane.b32.xlu0 %v1349, 15
      %v1731 = vpop.permute.xlu0 %1730
      %1732 = vrot.lane.b32.xlu0 %v1350, 15
      %v1733 = vpop.permute.xlu0 %1732
      %v1734 = vsel %vm840, %v1723, %v1725
      %v1735 = vsel %vm840, %v1725, %v1727
      %v1736 = vsel %vm840, %v1729, %v1731
      %v1737 = vsel %vm840, %v1731, %v1733
      %v1743 = vsel %vm1371, %v1419, 0
      %1745 = vmatprep.subr.bf16.mxu0 0
      %1746 = vmatpush1.bf16.msra.mxu0 0
      %1747 = vmatprep.subr.bf16.mxu0 0
      %1748 = vmatpush1.bf16.msra.mxu0 0
      %1749 = vmatprep.subr.bf16.mxu0 0
      %1750 = vmatpush1.bf16.msra.mxu0 0
      %1751 = vmatprep.subr.bf16.mxu0 0
      %1752 = vmatpush1.bf16.msra.mxu0 0
      %1753 = vmatprep.subr.bf16.mxu0 0
      %1754 = vmatpush1.bf16.msra.mxu0 0
      %1755 = vmatprep.subr.bf16.mxu0 0
      %1756 = vmatpush1.bf16.msra.mxu0 0
      %1757 = vmatprep.subr.bf16.mxu0 %v1737
      %1758 = vmatpush1.bf16.msra.mxu0 %v1736
      %1759 = vmatprep.subr.bf16.mxu0 %v1735
      %1760 = vmatpush1.bf16.msra.mxu0 %v1734
      %1761 = vmatprep.subr.bf16.mxu0 0
      %1762 = vmatpush2.bf16.msra.mxu0 0
      %1763 = vmatprep.subr.bf16.mxu0 0
      %1764 = vmatpush2.bf16.msra.mxu0 0
      %1765 = vmatprep.subr.bf16.mxu0 0
      %1766 = vmatpush2.bf16.msra.mxu0 0
      %1767 = vmatprep.subr.bf16.mxu0 0
      %1768 = vmatpush2.bf16.msra.mxu0 0
      %1769 = vmatprep.subr.bf16.mxu0 0
      %1770 = vmatpush2.bf16.msra.mxu0 0
      %1771 = vmatprep.subr.bf16.mxu0 0
      %1772 = vmatpush2.bf16.msra.mxu0 0
      %1773 = vmatprep.subr.bf16.mxu0 0
      %1774 = vmatpush2.bf16.msra.mxu0 0
      %1775 = vmatprep.subr.bf16.mxu0 0
      %1776 = vmatpush2.bf16.msra.mxu0 0
      %1777 = vmatprep.mubr.bf16.mxu0 0
      %1778 = vmatmul.mubr.bf16.gmra.mxu0 %v1743
      %v1779 = vpop.f32.mrf.mxu0
      %v1780 = vadd.f32 %v1716, %v1779
      %v1781 = vpop.f32.mrf.mxu0
      %v1782 = vadd.f32 %v1718, %v1781
      %v1783 = vpop.f32.mrf.mxu0
      %v1784 = vpop.f32.mrf.mxu0
      %1785 = vdwg.mxu0
      %s1786 = scalar_lea.vmem %s3, 24
      %v1787 = vld [vmem:[%s1786] sm:$0xf]
      %1788 = vrot.lane.b32.xlu0 %v1652, 113
      %v1789 = vpop.permute.xlu0 %1788
      %1790 = vrot.lane.b32.xlu0 %v1653, 113
      %v1791 = vpop.permute.xlu0 %1790
      %1792 = vrot.lane.b32.xlu0 %v1654, 113
      %v1793 = vpop.permute.xlu0 %1792
      %1794 = vrot.lane.b32.xlu0 %v1655, 113
      %v1795 = vpop.permute.xlu0 %1794
      %1796 = vrot.lane.b32.xlu0 %v1656, 113
      %v1797 = vpop.permute.xlu0 %1796
      %1798 = vrot.lane.b32.xlu0 %v1657, 113
      %v1799 = vpop.permute.xlu0 %1798
      %v1800 = vsel %vm934, %v1789, %v1791
      %v1801 = vsel %vm934, %v1791, %v1793
      %v1802 = vsel %vm934, %v1795, %v1797
      %v1803 = vsel %vm934, %v1797, %v1799
      %v1809 = vsel %vm1371, %v1787, 0
      %1811 = vmatprep.subr.bf16.mxu0 0
      %1812 = vmatpush1.bf16.msra.mxu0 0
      %1813 = vmatprep.subr.bf16.mxu0 0
      %1814 = vmatpush1.bf16.msra.mxu0 0
      %1815 = vmatprep.subr.bf16.mxu0 0
      %1816 = vmatpush1.bf16.msra.mxu0 0
      %1817 = vmatprep.subr.bf16.mxu0 0
      %1818 = vmatpush1.bf16.msra.mxu0 0
      %1819 = vmatprep.subr.bf16.mxu0 0
      %1820 = vmatpush1.bf16.msra.mxu0 0
      %1821 = vmatprep.subr.bf16.mxu0 0
      %1822 = vmatpush1.bf16.msra.mxu0 0
      %1823 = vmatprep.subr.bf16.mxu0 %v1803
      %1824 = vmatpush1.bf16.msra.mxu0 %v1802
      %1825 = vmatprep.subr.bf16.mxu0 %v1801
      %1826 = vmatpush1.bf16.msra.mxu0 %v1800
      %1827 = vmatprep.subr.bf16.mxu0 0
      %1828 = vmatpush2.bf16.msra.mxu0 0
      %1829 = vmatprep.subr.bf16.mxu0 0
      %1830 = vmatpush2.bf16.msra.mxu0 0
      %1831 = vmatprep.subr.bf16.mxu0 0
      %1832 = vmatpush2.bf16.msra.mxu0 0
      %1833 = vmatprep.subr.bf16.mxu0 0
      %1834 = vmatpush2.bf16.msra.mxu0 0
      %1835 = vmatprep.subr.bf16.mxu0 0
      %1836 = vmatpush2.bf16.msra.mxu0 0
      %1837 = vmatprep.subr.bf16.mxu0 0
      %1838 = vmatpush2.bf16.msra.mxu0 0
      %1839 = vmatprep.subr.bf16.mxu0 0
      %1840 = vmatpush2.bf16.msra.mxu0 0
      %1841 = vmatprep.subr.bf16.mxu0 0
      %1842 = vmatpush2.bf16.msra.mxu0 0
      %1843 = vmatprep.mubr.bf16.mxu0 0
      %1844 = vmatmul.mubr.bf16.gmra.mxu0 %v1809
      %v1845 = vpop.f32.mrf.mxu0
      %v1846 = vadd.f32 0.0, %v1845
      %v1847 = vpop.f32.mrf.mxu0
      %v1848 = vadd.f32 0.0, %v1847
      %v1849 = vpop.f32.mrf.mxu0
      %v1850 = vpop.f32.mrf.mxu0
      %1851 = vdwg.mxu0
      %v1852 = vadd.f32 %v1544, %v1846
      %v1853 = vadd.f32 %v1546, %v1848
      %s1854 = scalar_lea.vmem %s3, 28
      %v1855 = vld [vmem:[%s1854] sm:$0xf]
      %1856 = vrot.lane.b32.xlu0 %v1652, 112
      %v1857 = vpop.permute.xlu0 %1856
      %1858 = vrot.lane.b32.xlu0 %v1653, 112
      %v1859 = vpop.permute.xlu0 %1858
      %1860 = vrot.lane.b32.xlu0 %v1654, 112
      %v1861 = vpop.permute.xlu0 %1860
      %1862 = vrot.lane.b32.xlu0 %v1655, 112
      %v1863 = vpop.permute.xlu0 %1862
      %1864 = vrot.lane.b32.xlu0 %v1656, 112
      %v1865 = vpop.permute.xlu0 %1864
      %1866 = vrot.lane.b32.xlu0 %v1657, 112
      %v1867 = vpop.permute.xlu0 %1866
      %v1868 = vsel %vm1034, %v1857, %v1859
      %v1869 = vsel %vm1034, %v1859, %v1861
      %v1870 = vsel %vm1034, %v1863, %v1865
      %v1871 = vsel %vm1034, %v1865, %v1867
      %v1877 = vsel %vm1371, %v1855, 0
      %1879 = vmatprep.subr.bf16.mxu0 0
      %1880 = vmatpush1.bf16.msra.mxu0 0
      %1881 = vmatprep.subr.bf16.mxu0 0
      %1882 = vmatpush1.bf16.msra.mxu0 0
      %1883 = vmatprep.subr.bf16.mxu0 0
      %1884 = vmatpush1.bf16.msra.mxu0 0
      %1885 = vmatprep.subr.bf16.mxu0 0
      %1886 = vmatpush1.bf16.msra.mxu0 0
      %1887 = vmatprep.subr.bf16.mxu0 0
      %1888 = vmatpush1.bf16.msra.mxu0 0
      %1889 = vmatprep.subr.bf16.mxu0 0
      %1890 = vmatpush1.bf16.msra.mxu0 0
      %1891 = vmatprep.subr.bf16.mxu0 %v1871
      %1892 = vmatpush1.bf16.msra.mxu0 %v1870
      %1893 = vmatprep.subr.bf16.mxu0 %v1869
      %1894 = vmatpush1.bf16.msra.mxu0 %v1868
      %1895 = vmatprep.subr.bf16.mxu0 0
      %1896 = vmatpush2.bf16.msra.mxu0 0
      %1897 = vmatprep.subr.bf16.mxu0 0
      %1898 = vmatpush2.bf16.msra.mxu0 0
      %1899 = vmatprep.subr.bf16.mxu0 0
      %1900 = vmatpush2.bf16.msra.mxu0 0
      %1901 = vmatprep.subr.bf16.mxu0 0
      %1902 = vmatpush2.bf16.msra.mxu0 0
      %1903 = vmatprep.subr.bf16.mxu0 0
      %1904 = vmatpush2.bf16.msra.mxu0 0
      %1905 = vmatprep.subr.bf16.mxu0 0
      %1906 = vmatpush2.bf16.msra.mxu0 0
      %1907 = vmatprep.subr.bf16.mxu0 0
      %1908 = vmatpush2.bf16.msra.mxu0 0
      %1909 = vmatprep.subr.bf16.mxu0 0
      %1910 = vmatpush2.bf16.msra.mxu0 0
      %1911 = vmatprep.mubr.bf16.mxu0 0
      %1912 = vmatmul.mubr.bf16.gmra.mxu0 %v1877
      %v1913 = vpop.f32.mrf.mxu0
      %v1914 = vadd.f32 0.0, %v1913
      %v1915 = vpop.f32.mrf.mxu0
      %v1916 = vadd.f32 0.0, %v1915
      %v1917 = vpop.f32.mrf.mxu0
      %v1918 = vpop.f32.mrf.mxu0
      %1919 = vdwg.mxu0
      %v1920 = vadd.f32 %v1620, %v1914
      %v1921 = vadd.f32 %v1621, %v1916
      %s1922 = scalar_lea.vmem %s3, 32
      %v1923 = vld [vmem:[%s1922] sm:$0xf]
      %1924 = vrot.lane.b32.xlu0 %v1652, 111
      %v1925 = vpop.permute.xlu0 %1924
      %1926 = vrot.lane.b32.xlu0 %v1653, 111
      %v1927 = vpop.permute.xlu0 %1926
      %1928 = vrot.lane.b32.xlu0 %v1654, 111
      %v1929 = vpop.permute.xlu0 %1928
      %1930 = vrot.lane.b32.xlu0 %v1655, 111
      %v1931 = vpop.permute.xlu0 %1930
      %1932 = vrot.lane.b32.xlu0 %v1656, 111
      %v1933 = vpop.permute.xlu0 %1932
      %1934 = vrot.lane.b32.xlu0 %v1657, 111
      %v1935 = vpop.permute.xlu0 %1934
      %v1936 = vsel %vm1134, %v1925, %v1927
      %v1937 = vsel %vm1134, %v1927, %v1929
      %v1938 = vsel %vm1134, %v1931, %v1933
      %v1939 = vsel %vm1134, %v1933, %v1935
      %v1945 = vsel %vm1371, %v1923, 0
      %1947 = vmatprep.subr.bf16.mxu0 0
      %1948 = vmatpush1.bf16.msra.mxu0 0
      %1949 = vmatprep.subr.bf16.mxu0 0
      %1950 = vmatpush1.bf16.msra.mxu0 0
      %1951 = vmatprep.subr.bf16.mxu0 0
      %1952 = vmatpush1.bf16.msra.mxu0 0
      %1953 = vmatprep.subr.bf16.mxu0 0
      %1954 = vmatpush1.bf16.msra.mxu0 0
      %1955 = vmatprep.subr.bf16.mxu0 0
      %1956 = vmatpush1.bf16.msra.mxu0 0
      %1957 = vmatprep.subr.bf16.mxu0 0
      %1958 = vmatpush1.bf16.msra.mxu0 0
      %1959 = vmatprep.subr.bf16.mxu0 %v1939
      %1960 = vmatpush1.bf16.msra.mxu0 %v1938
      %1961 = vmatprep.subr.bf16.mxu0 %v1937
      %1962 = vmatpush1.bf16.msra.mxu0 %v1936
      %1963 = vmatprep.subr.bf16.mxu0 0
      %1964 = vmatpush2.bf16.msra.mxu0 0
      %1965 = vmatprep.subr.bf16.mxu0 0
      %1966 = vmatpush2.bf16.msra.mxu0 0
      %1967 = vmatprep.subr.bf16.mxu0 0
      %1968 = vmatpush2.bf16.msra.mxu0 0
      %1969 = vmatprep.subr.bf16.mxu0 0
      %1970 = vmatpush2.bf16.msra.mxu0 0
      %1971 = vmatprep.subr.bf16.mxu0 0
      %1972 = vmatpush2.bf16.msra.mxu0 0
      %1973 = vmatprep.subr.bf16.mxu0 0
      %1974 = vmatpush2.bf16.msra.mxu0 0
      %1975 = vmatprep.subr.bf16.mxu0 0
      %1976 = vmatpush2.bf16.msra.mxu0 0
      %1977 = vmatprep.subr.bf16.mxu0 0
      %1978 = vmatpush2.bf16.msra.mxu0 0
      %1979 = vmatprep.mubr.bf16.mxu0 0
      %1980 = vmatmul.mubr.bf16.gmra.mxu0 %v1945
      %v1981 = vpop.f32.mrf.mxu0
      %v1982 = vadd.f32 0.0, %v1981
      %v1983 = vpop.f32.mrf.mxu0
      %v1984 = vadd.f32 0.0, %v1983
      %v1985 = vpop.f32.mrf.mxu0
      %v1986 = vpop.f32.mrf.mxu0
      %1987 = vdwg.mxu0
      %v1988 = vadd.f32 %v1780, %v1982
      %v1989 = vadd.f32 %v1782, %v1984
      %v1990 = vmul.f32 %v1852, %v1214
      %v1991 = vmul.f32 %v1853, %v1218
      %v1992 = vadd.f32 %v1920, %v1990
      %v1993 = vadd.f32 %v1921, %v1991
      %v1994 = vmul.f32 %v1988, %v1237
      %v1995 = vmul.f32 %v1989, %v1241
      %v1996 = vadd.f32 %v1992, %v1994
      %v1997 = vadd.f32 %v1993, %v1995
      %v1998 = vmax.f32 %v1996, 0.0
      %v1999 = vmax.f32 %v1997, 0.0
      %2000 = vst [vmem:[%s251] sm:$0xff] %v1998
      %2001 = vst [vmem:[%s251 + $0x8] sm:$0xff] %v1999
      %p2002 = scmp.lt.s32.totalorder %s17, 1
      %s2003 = scalar_select %p2002, %s17, 1
      %s2004 = smul.addr %s2003, 2
      %s2005 = smul.addr %s2004, 8
      %s2006 = scalar_lea.vmem %s6, %s2005
      // Predicated region
      $region45: #{merge_module_forward.1} parent=43 // pred_check
        %p2007 = pneg %p166
      $region46: #{merge_module_forward.1} parent=43 // pred_check_branch
        %2009 = sbr.rel (%p2007) target = $region48
      $region47: #{merge_module_forward.1} parent=43 // pred_region
        _
      $region48: #{merge_module_forward.1} parent=43 // pred_fallthru
        _
    $region44: #{merge_module_forward.1} parent=5 // pred_fallthru
      _
    %p2010 = scmp.le.s32.totalorder 2, %s12
    // Predicated region
    $region49: #{merge_module_forward.1} parent=5 // pred_check
      %p2011 = pneg %p2010
    $region50: #{merge_module_forward.1} parent=5 // pred_check_branch
      %2013 = sbr.rel (%p2011) target = $region52
    $region51: #{merge_module_forward.1} parent=5 // pred_region
      %s2014 = ssub.s32 %s12, 2
      // Predicated region
      $region53: #{merge_module_forward.1} parent=51 // pred_check
        %p2015 = pneg %p172
      $region54: #{merge_module_forward.1} parent=51 // pred_check_branch
        %2017 = sbr.rel (%p2015) target = $region56
      $region55: #{merge_module_forward.1} parent=51 // pred_region
        %p2018 = scmp.lt.s32.totalorder %s18, 1
        %s2019 = scalar_select %p2018, %s18, 1
        %s2020 = smul.addr %s2019, 2
        %s2021 = smul.addr %s2020, 8
        %s2022 = scalar_lea.vmem %s6, %s2021
      $region56: #{merge_module_forward.1} parent=51 // pred_fallthru
        _
    $region52: #{merge_module_forward.1} parent=5 // pred_fallthru
      _
  $region6: #{merge_module_forward.1} parent=0 // loop_footer
    %s16 = sadd.s32 1, %s12
  $region7: #{merge_module_forward.1} parent=0 // loop_footer_branch
    %11 = sbr.rel target = $region3
  $region8: #{merge_module_forward.1} parent=0 // loop_exit
    _

</llo_original>
